<compile_context>
chip_gen: v7x
topology: tpu7x:2x2x1
jax: 0.10.0
libtpu: 0.0.40
codegen_flags: <defaults>
</compile_context>

<pallas_src>
import functools

import jax
import jax.numpy as jnp
import numpy as np
from jax.experimental import pallas as pl
from jax.experimental.pallas import tpu as pltpu


def _vmem_limit_bytes(default=64 * 1024 * 1024):
    """Generation-aware scoped-VMEM limit: ~3/4 of physical, capped at 96 MiB.
    128 MiB parts (v5e/v6e) -> 96 MiB; 64 MiB parts (v7x) -> 48 MiB."""
    try:
        cap = getattr(pltpu.get_tpu_info(), "vmem_capacity_bytes", None)
    except Exception:
        cap = None
    if not cap:
        return default
    return int(min(cap * 3 // 4, 96 * 1024 * 1024))


# ----------------------------------------------------------------------------
# Fused kernel: K/V proj (once per batch) + Q proj + MHA + output projection
# ----------------------------------------------------------------------------

def _cross_attn_kernel(x_ref, ctx_ref, wq_ref, bq_ref, wkv_ref, bkv_ref,
                       wp_ref, bp_ref, o_ref, kv_scr, attn_scr,
                       *, num_heads, scale):
    # x_ref:    (1, tq, C)  bf16   current batch / q-row tile
    # ctx_ref:  (1, M, C)   bf16   context of the current batch
    # wq_ref:   (C, C)  bf16,  bq_ref:  (1, C)  f32
    # wkv_ref:  (C, 2C) bf16,  bkv_ref: (1, 2C) f32     (K | V fused)
    # wp_ref:   (C, C)  bf16,  bp_ref:  (1, C)  f32
    # kv_scr:   (2H, M, Dh) bf16  head-major: rows 0..H-1 = K_h, H..2H-1 = V_h
    # attn_scr: (tq, C) bf16      concatenated per-head attention outputs
    H = num_heads
    C = x_ref.shape[-1]
    Dh = C // H
    qi = pl.program_id(1)

    # --- K/V projection: once per batch, one full-C-contraction MXU call, ---
    # --- split head-major ONCE so all per-head reads below are free views. ---
    @pl.when(qi == 0)
    def _():
        kv = jnp.dot(ctx_ref[0], wkv_ref[...],
                     preferred_element_type=jnp.float32) + bkv_ref[...]
        kv = kv.astype(kv_scr.dtype)                       # (M, 2C) bf16
        for h in range(H):
            kv_scr[h] = kv[:, h * Dh:(h + 1) * Dh]                 # K_h
            kv_scr[H + h] = kv[:, C + h * Dh:C + (h + 1) * Dh]     # V_h

    # --- Q projection: single C-wide matmul; 1/sqrt(Dh) folded into q. ---
    q = jnp.dot(x_ref[0], wq_ref[...],
                preferred_element_type=jnp.float32) + bq_ref[...]
    q = (q * scale).astype(jnp.bfloat16)                   # (tq, C)

    # --- Per-head attention: bf16 MXU operands, f32 softmax statistics. ---
    # TODO(synk): for long context M, add a kv grid axis with online-softmax
    # (m/l/acc scratch, pl.when init/finalize) instead of the dense (tq, M)
    # score matrix; and for large H switch to a fori_loop over a head-major q.
    for h in range(H):
        qh = q[:, h * Dh:(h + 1) * Dh]                     # (tq, Dh)
        kh = kv_scr[h]                                     # (M, Dh) free view
        vh = kv_scr[H + h]                                 # (M, Dh) free view
        s = jax.lax.dot_general(qh, kh, (((1,), (1,)), ((), ())),
                                preferred_element_type=jnp.float32)   # (tq, M)
        s = s - jnp.max(s, axis=-1, keepdims=True)
        p = jnp.exp(s)
        inv = pl.reciprocal(jnp.sum(p, axis=-1, keepdims=True), approx=True)
        p = (p * inv).astype(jnp.bfloat16)                 # softmax, EUP recip
        oh = jnp.dot(p, vh, preferred_element_type=jnp.float32)       # (tq, Dh)
        attn_scr[:, h * Dh:(h + 1) * Dh] = oh.astype(attn_scr.dtype)

    # --- Single lane-dense C-wide output projection + store. ---
    o_ref[0] = jnp.dot(attn_scr[...], wp_ref[...],
                       preferred_element_type=jnp.float32) + bp_ref[...]


def fused_cross_attention(x, context, wq, bq, wkv, bkv, wp, bp, num_heads,
                          *, tq_max=512):
    """x: (B, N, C) f32, context: (B, M, C) f32 -> (B, N, C) f32."""
    B, N, C = x.shape
    M = context.shape[1]
    H = num_heads
    Dh = C // H
    scale = Dh ** (-0.5)

    # bf16 MXU operands; biases stay f32 (added to f32 accumulators).
    xb = x.astype(jnp.bfloat16)
    cb = context.astype(jnp.bfloat16)
    wq = wq.astype(jnp.bfloat16)
    wkv = wkv.astype(jnp.bfloat16)
    wp = wp.astype(jnp.bfloat16)
    bq = bq.reshape(1, C).astype(jnp.float32)
    bkv = bkv.reshape(1, 2 * C).astype(jnp.float32)
    bp = bp.reshape(1, C).astype(jnp.float32)

    tq = N if N <= tq_max else tq_max
    nq = pl.cdiv(N, tq)

    kern = functools.partial(_cross_attn_kernel, num_heads=H, scale=scale)

    def _const(shape):
        # Grid-constant block: fetched once, single-buffered to save VMEM.
        return pl.BlockSpec(shape, lambda b, qi: (0,) * len(shape),
                            pipeline_mode=pl.Buffered(1))

    flops = (2 * B * M * C * 2 * C       # fused K/V projection
             + 2 * B * N * C * C         # Q projection
             + 2 * B * N * M * C         # scores
             + 2 * B * N * M * C         # p @ v
             + 2 * B * N * C * C)        # output projection
    bytes_accessed = (2 * (B * N * C + B * M * C + 4 * C * C)   # bf16 inputs
                      + 4 * (4 * C)                             # f32 biases
                      + 4 * B * N * C)                          # f32 output

    return pl.pallas_call(
        kern,
        out_shape=jax.ShapeDtypeStruct((B, N, C), jnp.float32),
        grid=(B, nq),
        in_specs=[
            pl.BlockSpec((1, tq, C), lambda b, qi: (b, qi, 0)),   # x tile
            pl.BlockSpec((1, M, C), lambda b, qi: (b, 0, 0)),     # context/batch
            _const((C, C)),          # wq
            _const((1, C)),          # bq
            _const((C, 2 * C)),      # wkv
            _const((1, 2 * C)),      # bkv
            _const((C, C)),          # wp
            _const((1, C)),          # bp
        ],
        out_specs=pl.BlockSpec((1, tq, C), lambda b, qi: (b, qi, 0)),
        scratch_shapes=[
            pltpu.VMEM((2 * H, M, Dh), jnp.bfloat16),   # head-major K|V / batch
            pltpu.VMEM((tq, C), jnp.bfloat16),          # concat per-head outputs
        ],
        compiler_params=pltpu.CompilerParams(
            # q-tile axis is "arbitrary": kv scratch carries across q tiles of
            # the same batch; batch axis is megacore-parallel.
            dimension_semantics=("parallel", "arbitrary"),
            vmem_limit_bytes=_vmem_limit_bytes(),
        ),
        cost_estimate=pl.CostEstimate(
            flops=flops,
            transcendentals=B * H * N * M,
            bytes_accessed=bytes_accessed,
        ),
    )(xb, cb, wq, bq, wkv, bkv, wp, bp)


# ----------------------------------------------------------------------------
# CrossAttention forward
# ----------------------------------------------------------------------------

def cross_attention_forward(params, x, context, num_heads):
    # Fuse K and V projections into one (C, 2C) weight so the kernel does a
    # single context matmul per batch.
    wkv = jnp.concatenate([params["wk"], params["wv"]], axis=1)   # (C, 2C)
    bkv = jnp.concatenate([params["bk"], params["bv"]], axis=0)   # (2C,)
    return fused_cross_attention(
        x, context, params["wq"], params["bq"], wkv, bkv,
        params["wp"], params["bp"], num_heads)


def cross_attention_reference(params, x, context, num_heads):
    B, N, C = x.shape
    M = context.shape[1]
    Dh = C // num_heads
    scale = Dh ** (-0.5)
    q = (x.reshape(B * N, C) @ params["wq"] + params["bq"]).reshape(B, N, num_heads, Dh).transpose(0, 2, 1, 3)
    k = (context.reshape(B * M, C) @ params["wk"] + params["bk"]).reshape(B, M, num_heads, Dh).transpose(0, 2, 1, 3)
    v = (context.reshape(B * M, C) @ params["wv"] + params["bv"]).reshape(B, M, num_heads, Dh).transpose(0, 2, 1, 3)
    attn = jnp.einsum("bhnd,bhmd->bhnm", q, k) * scale
    attn = jax.nn.softmax(attn, axis=-1)
    o = jnp.einsum("bhnm,bhmd->bhnd", attn, v).transpose(0, 2, 1, 3).reshape(B, N, C)
    return (o.reshape(B * N, C) @ params["wp"] + params["bp"]).reshape(B, N, C)


def init_params(key, dim):
    ks = jax.random.split(key, 8)
    s = 1.0 / np.sqrt(dim)
    return {
        "wq": jax.random.uniform(ks[0], (dim, dim), jnp.float32, -s, s),
        "bq": jax.random.uniform(ks[1], (dim,), jnp.float32, -s, s),
        "wk": jax.random.uniform(ks[2], (dim, dim), jnp.float32, -s, s),
        "bk": jax.random.uniform(ks[3], (dim,), jnp.float32, -s, s),
        "wv": jax.random.uniform(ks[4], (dim, dim), jnp.float32, -s, s),
        "bv": jax.random.uniform(ks[5], (dim,), jnp.float32, -s, s),
        "wp": jax.random.uniform(ks[6], (dim, dim), jnp.float32, -s, s),
        "bp": jax.random.uniform(ks[7], (dim,), jnp.float32, -s, s),
    }


if __name__ == "__main__":
    B, N, M, C, H = 2, 8, 6, 32, 8     # dim=32, num_heads=8 -> head_dim=4

    key = jax.random.PRNGKey(0)
    kx, kc, kp = jax.random.split(key, 3)
    x = jax.random.normal(kx, (B, N, C), jnp.float32)
    context = jax.random.normal(kc, (B, M, C), jnp.float32)
    params = init_params(kp, C)

    out = cross_attention_forward(params, x, context, H)
    out = jax.block_until_ready(out)

    ref = cross_attention_reference(params, x, context, H)
    assert out.shape == (B, N, C)
    # Tolerance reflects bf16 MXU operands (f32 accumulation / f32 softmax)
    # and the hardware approximate reciprocal in the softmax denominator.
    np.testing.assert_allclose(np.asarray(out), np.asarray(ref),
                               atol=5e-2, rtol=5e-2)

    print("KERNEL_OK")
</pallas_src>

<mosaic_0001>
module attributes {stable_mosaic.version = 11 : i64} {
  func.func @_cross_attn_kernel(%arg0: i32, %arg1: i32, %arg2: memref<1x8x32xbf16, #tpu.memory_space<vmem>>, %arg3: memref<1x6x32xbf16, #tpu.memory_space<vmem>>, %arg4: memref<32x32xbf16, #tpu.memory_space<vmem>>, %arg5: memref<1x32xf32, #tpu.memory_space<vmem>>, %arg6: memref<32x64xbf16, #tpu.memory_space<vmem>>, %arg7: memref<1x64xf32, #tpu.memory_space<vmem>>, %arg8: memref<32x32xbf16, #tpu.memory_space<vmem>>, %arg9: memref<1x32xf32, #tpu.memory_space<vmem>>, %arg10: memref<1x8x32xf32, #tpu.memory_space<vmem>>, %arg11: memref<16x6x4xbf16, #tpu.memory_space<vmem>>, %arg12: memref<8x32xbf16, #tpu.memory_space<vmem>>) attributes {dimension_semantics = [#tpu.dimension_semantics<parallel>, #tpu.dimension_semantics<arbitrary>], iteration_bounds = array<i64: 2, 1>, scalar_prefetch = 0 : i64, scratch_operands = 2 : i64, tpu.core_type = #tpu.core_type<tc>, window_params = [{transform_indices = @transform_0, window_bounds = array<i64: 1, 8, 32>}, {transform_indices = @transform_1, window_bounds = array<i64: 1, 6, 32>}, {pipeline_mode = #tpu.pipeline_mode<synchronous>, transform_indices = @transform_2, window_bounds = array<i64: 32, 32>}, {pipeline_mode = #tpu.pipeline_mode<synchronous>, transform_indices = @transform_3, window_bounds = array<i64: 1, 32>}, {pipeline_mode = #tpu.pipeline_mode<synchronous>, transform_indices = @transform_4, window_bounds = array<i64: 32, 64>}, {pipeline_mode = #tpu.pipeline_mode<synchronous>, transform_indices = @transform_5, window_bounds = array<i64: 1, 64>}, {pipeline_mode = #tpu.pipeline_mode<synchronous>, transform_indices = @transform_6, window_bounds = array<i64: 32, 32>}, {pipeline_mode = #tpu.pipeline_mode<synchronous>, transform_indices = @transform_7, window_bounds = array<i64: 1, 32>}, {transform_indices = @transform_8, window_bounds = array<i64: 1, 8, 32>}]} {
    %c0_i32 = arith.constant 0 : i32
    %0 = arith.cmpi eq, %arg1, %c0_i32 : i32
    %1 = arith.extui %0 : i1 to i32
    %c0_i32_0 = arith.constant 0 : i32
    %2 = arith.cmpi ne, %1, %c0_i32_0 : i32
    scf.if %2 {
      %c0_95 = arith.constant 0 : index
      %c0_96 = arith.constant 0 : index
      %c0_97 = arith.constant 0 : index
      %182 = vector.load %arg3[%c0_95, %c0_96, %c0_97] : memref<1x6x32xbf16, #tpu.memory_space<vmem>>, vector<1x6x32xbf16>
      %183 = vector.shape_cast %182 : vector<1x6x32xbf16> to vector<6x32xbf16>
      %c0_98 = arith.constant 0 : index
      %c0_99 = arith.constant 0 : index
      %184 = vector.load %arg6[%c0_98, %c0_99] : memref<32x64xbf16, #tpu.memory_space<vmem>>, vector<32x64xbf16>
      %cst_100 = arith.constant dense<0.000000e+00> : vector<6x64xf32>
      %185 = tpu.matmul %183, %184, %cst_100 {dimension_numbers = #tpu.dot_dimension_numbers<[1], [0], [0], [1], [0, 0, 1, 1], [], []>} : vector<6x32xbf16>, vector<32x64xbf16>, vector<6x64xf32> -> vector<6x64xf32>
      %c0_101 = arith.constant 0 : index
      %c0_102 = arith.constant 0 : index
      %186 = vector.load %arg7[%c0_101, %c0_102] : memref<1x64xf32, #tpu.memory_space<vmem>>, vector<1x64xf32>
      %187 = vector.broadcast %186 : vector<1x64xf32> to vector<6x64xf32>
      %188 = arith.addf %185, %187 : vector<6x64xf32>
      %189 = arith.truncf %188 : vector<6x64xf32> to vector<6x64xbf16>
      %190 = vector.extract_strided_slice %189 {offsets = [0, 0], sizes = [6, 4], strides = [1, 1]} : vector<6x64xbf16> to vector<6x4xbf16>
      %c0_103 = arith.constant 0 : index
      %c0_104 = arith.constant 0 : index
      %c0_105 = arith.constant 0 : index
      %191 = vector.load %arg11[%c0_103, %c0_104, %c0_105] : memref<16x6x4xbf16, #tpu.memory_space<vmem>>, vector<1x6x4xbf16>
      %192 = vector.shape_cast %191 : vector<1x6x4xbf16> to vector<6x4xbf16>
      %193 = vector.shape_cast %190 : vector<6x4xbf16> to vector<1x6x4xbf16>
      tpu.vector_store %arg11[%c0_103, %c0_104, %c0_105], %193 {strides = array<i32>} : memref<16x6x4xbf16, #tpu.memory_space<vmem>>, vector<1x6x4xbf16>,
      %194 = vector.extract_strided_slice %189 {offsets = [0, 32], sizes = [6, 4], strides = [1, 1]} : vector<6x64xbf16> to vector<6x4xbf16>
      %c8_106 = arith.constant 8 : index
      %c0_107 = arith.constant 0 : index
      %c0_108 = arith.constant 0 : index
      %195 = vector.load %arg11[%c8_106, %c0_107, %c0_108] : memref<16x6x4xbf16, #tpu.memory_space<vmem>>, vector<1x6x4xbf16>
      %196 = vector.shape_cast %195 : vector<1x6x4xbf16> to vector<6x4xbf16>
      %197 = vector.shape_cast %194 : vector<6x4xbf16> to vector<1x6x4xbf16>
      tpu.vector_store %arg11[%c8_106, %c0_107, %c0_108], %197 {strides = array<i32>} : memref<16x6x4xbf16, #tpu.memory_space<vmem>>, vector<1x6x4xbf16>,
      %198 = vector.extract_strided_slice %189 {offsets = [0, 4], sizes = [6, 4], strides = [1, 1]} : vector<6x64xbf16> to vector<6x4xbf16>
      %c1_109 = arith.constant 1 : index
      %c0_110 = arith.constant 0 : index
      %c0_111 = arith.constant 0 : index
      %199 = vector.load %arg11[%c1_109, %c0_110, %c0_111] : memref<16x6x4xbf16, #tpu.memory_space<vmem>>, vector<1x6x4xbf16>
      %200 = vector.shape_cast %199 : vector<1x6x4xbf16> to vector<6x4xbf16>
      %201 = vector.shape_cast %198 : vector<6x4xbf16> to vector<1x6x4xbf16>
      tpu.vector_store %arg11[%c1_109, %c0_110, %c0_111], %201 {strides = array<i32>} : memref<16x6x4xbf16, #tpu.memory_space<vmem>>, vector<1x6x4xbf16>,
      %202 = vector.extract_strided_slice %189 {offsets = [0, 36], sizes = [6, 4], strides = [1, 1]} : vector<6x64xbf16> to vector<6x4xbf16>
      %c9_112 = arith.constant 9 : index
      %c0_113 = arith.constant 0 : index
      %c0_114 = arith.constant 0 : index
      %203 = vector.load %arg11[%c9_112, %c0_113, %c0_114] : memref<16x6x4xbf16, #tpu.memory_space<vmem>>, vector<1x6x4xbf16>
      %204 = vector.shape_cast %203 : vector<1x6x4xbf16> to vector<6x4xbf16>
      %205 = vector.shape_cast %202 : vector<6x4xbf16> to vector<1x6x4xbf16>
      tpu.vector_store %arg11[%c9_112, %c0_113, %c0_114], %205 {strides = array<i32>} : memref<16x6x4xbf16, #tpu.memory_space<vmem>>, vector<1x6x4xbf16>,
      %206 = vector.extract_strided_slice %189 {offsets = [0, 8], sizes = [6, 4], strides = [1, 1]} : vector<6x64xbf16> to vector<6x4xbf16>
      %c2_115 = arith.constant 2 : index
      %c0_116 = arith.constant 0 : index
      %c0_117 = arith.constant 0 : index
      %207 = vector.load %arg11[%c2_115, %c0_116, %c0_117] : memref<16x6x4xbf16, #tpu.memory_space<vmem>>, vector<1x6x4xbf16>
      %208 = vector.shape_cast %207 : vector<1x6x4xbf16> to vector<6x4xbf16>
      %209 = vector.shape_cast %206 : vector<6x4xbf16> to vector<1x6x4xbf16>
      tpu.vector_store %arg11[%c2_115, %c0_116, %c0_117], %209 {strides = array<i32>} : memref<16x6x4xbf16, #tpu.memory_space<vmem>>, vector<1x6x4xbf16>,
      %210 = vector.extract_strided_slice %189 {offsets = [0, 40], sizes = [6, 4], strides = [1, 1]} : vector<6x64xbf16> to vector<6x4xbf16>
      %c10_118 = arith.constant 10 : index
      %c0_119 = arith.constant 0 : index
      %c0_120 = arith.constant 0 : index
      %211 = vector.load %arg11[%c10_118, %c0_119, %c0_120] : memref<16x6x4xbf16, #tpu.memory_space<vmem>>, vector<1x6x4xbf16>
      %212 = vector.shape_cast %211 : vector<1x6x4xbf16> to vector<6x4xbf16>
      %213 = vector.shape_cast %210 : vector<6x4xbf16> to vector<1x6x4xbf16>
      tpu.vector_store %arg11[%c10_118, %c0_119, %c0_120], %213 {strides = array<i32>} : memref<16x6x4xbf16, #tpu.memory_space<vmem>>, vector<1x6x4xbf16>,
      %214 = vector.extract_strided_slice %189 {offsets = [0, 12], sizes = [6, 4], strides = [1, 1]} : vector<6x64xbf16> to vector<6x4xbf16>
      %c3_121 = arith.constant 3 : index
      %c0_122 = arith.constant 0 : index
      %c0_123 = arith.constant 0 : index
      %215 = vector.load %arg11[%c3_121, %c0_122, %c0_123] : memref<16x6x4xbf16, #tpu.memory_space<vmem>>, vector<1x6x4xbf16>
      %216 = vector.shape_cast %215 : vector<1x6x4xbf16> to vector<6x4xbf16>
      %217 = vector.shape_cast %214 : vector<6x4xbf16> to vector<1x6x4xbf16>
      tpu.vector_store %arg11[%c3_121, %c0_122, %c0_123], %217 {strides = array<i32>} : memref<16x6x4xbf16, #tpu.memory_space<vmem>>, vector<1x6x4xbf16>,
      %218 = vector.extract_strided_slice %189 {offsets = [0, 44], sizes = [6, 4], strides = [1, 1]} : vector<6x64xbf16> to vector<6x4xbf16>
      %c11_124 = arith.constant 11 : index
      %c0_125 = arith.constant 0 : index
      %c0_126 = arith.constant 0 : index
      %219 = vector.load %arg11[%c11_124, %c0_125, %c0_126] : memref<16x6x4xbf16, #tpu.memory_space<vmem>>, vector<1x6x4xbf16>
      %220 = vector.shape_cast %219 : vector<1x6x4xbf16> to vector<6x4xbf16>
      %221 = vector.shape_cast %218 : vector<6x4xbf16> to vector<1x6x4xbf16>
      tpu.vector_store %arg11[%c11_124, %c0_125, %c0_126], %221 {strides = array<i32>} : memref<16x6x4xbf16, #tpu.memory_space<vmem>>, vector<1x6x4xbf16>,
      %222 = vector.extract_strided_slice %189 {offsets = [0, 16], sizes = [6, 4], strides = [1, 1]} : vector<6x64xbf16> to vector<6x4xbf16>
      %c4_127 = arith.constant 4 : index
      %c0_128 = arith.constant 0 : index
      %c0_129 = arith.constant 0 : index
      %223 = vector.load %arg11[%c4_127, %c0_128, %c0_129] : memref<16x6x4xbf16, #tpu.memory_space<vmem>>, vector<1x6x4xbf16>
      %224 = vector.shape_cast %223 : vector<1x6x4xbf16> to vector<6x4xbf16>
      %225 = vector.shape_cast %222 : vector<6x4xbf16> to vector<1x6x4xbf16>
      tpu.vector_store %arg11[%c4_127, %c0_128, %c0_129], %225 {strides = array<i32>} : memref<16x6x4xbf16, #tpu.memory_space<vmem>>, vector<1x6x4xbf16>,
      %226 = vector.extract_strided_slice %189 {offsets = [0, 48], sizes = [6, 4], strides = [1, 1]} : vector<6x64xbf16> to vector<6x4xbf16>
      %c12_130 = arith.constant 12 : index
      %c0_131 = arith.constant 0 : index
      %c0_132 = arith.constant 0 : index
      %227 = vector.load %arg11[%c12_130, %c0_131, %c0_132] : memref<16x6x4xbf16, #tpu.memory_space<vmem>>, vector<1x6x4xbf16>
      %228 = vector.shape_cast %227 : vector<1x6x4xbf16> to vector<6x4xbf16>
      %229 = vector.shape_cast %226 : vector<6x4xbf16> to vector<1x6x4xbf16>
      tpu.vector_store %arg11[%c12_130, %c0_131, %c0_132], %229 {strides = array<i32>} : memref<16x6x4xbf16, #tpu.memory_space<vmem>>, vector<1x6x4xbf16>,
      %230 = vector.extract_strided_slice %189 {offsets = [0, 20], sizes = [6, 4], strides = [1, 1]} : vector<6x64xbf16> to vector<6x4xbf16>
      %c5_133 = arith.constant 5 : index
      %c0_134 = arith.constant 0 : index
      %c0_135 = arith.constant 0 : index
      %231 = vector.load %arg11[%c5_133, %c0_134, %c0_135] : memref<16x6x4xbf16, #tpu.memory_space<vmem>>, vector<1x6x4xbf16>
      %232 = vector.shape_cast %231 : vector<1x6x4xbf16> to vector<6x4xbf16>
      %233 = vector.shape_cast %230 : vector<6x4xbf16> to vector<1x6x4xbf16>
      tpu.vector_store %arg11[%c5_133, %c0_134, %c0_135], %233 {strides = array<i32>} : memref<16x6x4xbf16, #tpu.memory_space<vmem>>, vector<1x6x4xbf16>,
      %234 = vector.extract_strided_slice %189 {offsets = [0, 52], sizes = [6, 4], strides = [1, 1]} : vector<6x64xbf16> to vector<6x4xbf16>
      %c13_136 = arith.constant 13 : index
      %c0_137 = arith.constant 0 : index
      %c0_138 = arith.constant 0 : index
      %235 = vector.load %arg11[%c13_136, %c0_137, %c0_138] : memref<16x6x4xbf16, #tpu.memory_space<vmem>>, vector<1x6x4xbf16>
      %236 = vector.shape_cast %235 : vector<1x6x4xbf16> to vector<6x4xbf16>
      %237 = vector.shape_cast %234 : vector<6x4xbf16> to vector<1x6x4xbf16>
      tpu.vector_store %arg11[%c13_136, %c0_137, %c0_138], %237 {strides = array<i32>} : memref<16x6x4xbf16, #tpu.memory_space<vmem>>, vector<1x6x4xbf16>,
      %238 = vector.extract_strided_slice %189 {offsets = [0, 24], sizes = [6, 4], strides = [1, 1]} : vector<6x64xbf16> to vector<6x4xbf16>
      %c6_139 = arith.constant 6 : index
      %c0_140 = arith.constant 0 : index
      %c0_141 = arith.constant 0 : index
      %239 = vector.load %arg11[%c6_139, %c0_140, %c0_141] : memref<16x6x4xbf16, #tpu.memory_space<vmem>>, vector<1x6x4xbf16>
      %240 = vector.shape_cast %239 : vector<1x6x4xbf16> to vector<6x4xbf16>
      %241 = vector.shape_cast %238 : vector<6x4xbf16> to vector<1x6x4xbf16>
      tpu.vector_store %arg11[%c6_139, %c0_140, %c0_141], %241 {strides = array<i32>} : memref<16x6x4xbf16, #tpu.memory_space<vmem>>, vector<1x6x4xbf16>,
      %242 = vector.extract_strided_slice %189 {offsets = [0, 56], sizes = [6, 4], strides = [1, 1]} : vector<6x64xbf16> to vector<6x4xbf16>
      %c14_142 = arith.constant 14 : index
      %c0_143 = arith.constant 0 : index
      %c0_144 = arith.constant 0 : index
      %243 = vector.load %arg11[%c14_142, %c0_143, %c0_144] : memref<16x6x4xbf16, #tpu.memory_space<vmem>>, vector<1x6x4xbf16>
      %244 = vector.shape_cast %243 : vector<1x6x4xbf16> to vector<6x4xbf16>
      %245 = vector.shape_cast %242 : vector<6x4xbf16> to vector<1x6x4xbf16>
      tpu.vector_store %arg11[%c14_142, %c0_143, %c0_144], %245 {strides = array<i32>} : memref<16x6x4xbf16, #tpu.memory_space<vmem>>, vector<1x6x4xbf16>,
      %246 = vector.extract_strided_slice %189 {offsets = [0, 28], sizes = [6, 4], strides = [1, 1]} : vector<6x64xbf16> to vector<6x4xbf16>
      %c7_145 = arith.constant 7 : index
      %c0_146 = arith.constant 0 : index
      %c0_147 = arith.constant 0 : index
      %247 = vector.load %arg11[%c7_145, %c0_146, %c0_147] : memref<16x6x4xbf16, #tpu.memory_space<vmem>>, vector<1x6x4xbf16>
      %248 = vector.shape_cast %247 : vector<1x6x4xbf16> to vector<6x4xbf16>
      %249 = vector.shape_cast %246 : vector<6x4xbf16> to vector<1x6x4xbf16>
      tpu.vector_store %arg11[%c7_145, %c0_146, %c0_147], %249 {strides = array<i32>} : memref<16x6x4xbf16, #tpu.memory_space<vmem>>, vector<1x6x4xbf16>,
      %250 = vector.extract_strided_slice %189 {offsets = [0, 60], sizes = [6, 4], strides = [1, 1]} : vector<6x64xbf16> to vector<6x4xbf16>
      %c15_148 = arith.constant 15 : index
      %c0_149 = arith.constant 0 : index
      %c0_150 = arith.constant 0 : index
      %251 = vector.load %arg11[%c15_148, %c0_149, %c0_150] : memref<16x6x4xbf16, #tpu.memory_space<vmem>>, vector<1x6x4xbf16>
      %252 = vector.shape_cast %251 : vector<1x6x4xbf16> to vector<6x4xbf16>
      %253 = vector.shape_cast %250 : vector<6x4xbf16> to vector<1x6x4xbf16>
      tpu.vector_store %arg11[%c15_148, %c0_149, %c0_150], %253 {strides = array<i32>} : memref<16x6x4xbf16, #tpu.memory_space<vmem>>, vector<1x6x4xbf16>,
    } else {
    }
    %c0 = arith.constant 0 : index
    %c0_1 = arith.constant 0 : index
    %c0_2 = arith.constant 0 : index
    %3 = vector.load %arg2[%c0, %c0_1, %c0_2] : memref<1x8x32xbf16, #tpu.memory_space<vmem>>, vector<1x8x32xbf16>
    %4 = vector.shape_cast %3 : vector<1x8x32xbf16> to vector<8x32xbf16>
    %c0_3 = arith.constant 0 : index
    %c0_4 = arith.constant 0 : index
    %5 = vector.load %arg4[%c0_3, %c0_4] : memref<32x32xbf16, #tpu.memory_space<vmem>>, vector<32x32xbf16>
    %cst = arith.constant dense<0.000000e+00> : vector<8x32xf32>
    %6 = tpu.matmul %4, %5, %cst {dimension_numbers = #tpu.dot_dimension_numbers<[1], [0], [0], [1], [0, 0, 1, 1], [], []>} : vector<8x32xbf16>, vector<32x32xbf16>, vector<8x32xf32> -> vector<8x32xf32>
    %c0_5 = arith.constant 0 : index
    %c0_6 = arith.constant 0 : index
    %7 = vector.load %arg5[%c0_5, %c0_6] : memref<1x32xf32, #tpu.memory_space<vmem>>, vector<1x32xf32>
    %8 = vector.broadcast %7 : vector<1x32xf32> to vector<8x32xf32>
    %9 = arith.addf %6, %8 : vector<8x32xf32>
    %cst_7 = arith.constant 5.000000e-01 : f32
    %10 = vector.broadcast %cst_7 : f32 to vector<8x32xf32>
    %11 = arith.mulf %9, %10 : vector<8x32xf32>
    %12 = arith.truncf %11 : vector<8x32xf32> to vector<8x32xbf16>
    %13 = vector.extract_strided_slice %12 {offsets = [0, 0], sizes = [8, 4], strides = [1, 1]} : vector<8x32xbf16> to vector<8x4xbf16>
    %c0_8 = arith.constant 0 : index
    %c0_9 = arith.constant 0 : index
    %c0_10 = arith.constant 0 : index
    %14 = vector.load %arg11[%c0_8, %c0_9, %c0_10] : memref<16x6x4xbf16, #tpu.memory_space<vmem>>, vector<1x6x4xbf16>
    %15 = vector.shape_cast %14 : vector<1x6x4xbf16> to vector<6x4xbf16>
    %c8 = arith.constant 8 : index
    %c0_11 = arith.constant 0 : index
    %c0_12 = arith.constant 0 : index
    %16 = vector.load %arg11[%c8, %c0_11, %c0_12] : memref<16x6x4xbf16, #tpu.memory_space<vmem>>, vector<1x6x4xbf16>
    %17 = vector.shape_cast %16 : vector<1x6x4xbf16> to vector<6x4xbf16>
    %cst_13 = arith.constant dense<0.000000e+00> : vector<8x6xf32>
    %18 = tpu.matmul %13, %15, %cst_13 {dimension_numbers = #tpu.dot_dimension_numbers<[1], [1], [0], [0], [0, 0, 1, 0], [], []>} : vector<8x4xbf16>, vector<6x4xbf16>, vector<8x6xf32> -> vector<8x6xf32>
    %cst_14 = arith.constant dense<0xFF800000> : vector<8xf32>
    %19 = vector.multi_reduction <maximumf>, %18, %cst_14 [1] : vector<8x6xf32> to vector<8xf32>
    %20 = vector.shape_cast %19 : vector<8xf32> to vector<8x1xf32>
    %21 = vector.broadcast %20 : vector<8x1xf32> to vector<8x6xf32>
    %22 = arith.subf %18, %21 : vector<8x6xf32>
    %23 = math.exp %22 : vector<8x6xf32>
    %cst_15 = arith.constant dense<0.000000e+00> : vector<8xf32>
    %24 = vector.multi_reduction <add>, %23, %cst_15 [1] : vector<8x6xf32> to vector<8xf32>
    %25 = vector.shape_cast %24 : vector<8xf32> to vector<8x1xf32>
    %26 = tpu.reciprocal %25 {approx = true} : vector<8x1xf32> -> vector<8x1xf32>
    %27 = vector.broadcast %26 : vector<8x1xf32> to vector<8x6xf32>
    %28 = arith.mulf %23, %27 : vector<8x6xf32>
    %29 = arith.truncf %28 : vector<8x6xf32> to vector<8x6xbf16>
    %cst_16 = arith.constant dense<0.000000e+00> : vector<8x4xf32>
    %30 = tpu.matmul %29, %17, %cst_16 {dimension_numbers = #tpu.dot_dimension_numbers<[1], [0], [0], [1], [0, 0, 1, 1], [], []>} : vector<8x6xbf16>, vector<6x4xbf16>, vector<8x4xf32> -> vector<8x4xf32>
    %31 = arith.truncf %30 : vector<8x4xf32> to vector<8x4xbf16>
    %c0_17 = arith.constant 0 : index
    %c0_18 = arith.constant 0 : index
    %32 = vector.load %arg12[%c0_17, %c0_18] : memref<8x32xbf16, #tpu.memory_space<vmem>>, vector<8x4xbf16>
    tpu.vector_store %arg12[%c0_17, %c0_18], %31 {strides = array<i32>} : memref<8x32xbf16, #tpu.memory_space<vmem>>, vector<8x4xbf16>,
    %33 = vector.extract_strided_slice %12 {offsets = [0, 4], sizes = [8, 4], strides = [1, 1]} : vector<8x32xbf16> to vector<8x4xbf16>
    %c1 = arith.constant 1 : index
    %c0_19 = arith.constant 0 : index
    %c0_20 = arith.constant 0 : index
    %34 = vector.load %arg11[%c1, %c0_19, %c0_20] : memref<16x6x4xbf16, #tpu.memory_space<vmem>>, vector<1x6x4xbf16>
    %35 = vector.shape_cast %34 : vector<1x6x4xbf16> to vector<6x4xbf16>
    %c9 = arith.constant 9 : index
    %c0_21 = arith.constant 0 : index
    %c0_22 = arith.constant 0 : index
    %36 = vector.load %arg11[%c9, %c0_21, %c0_22] : memref<16x6x4xbf16, #tpu.memory_space<vmem>>, vector<1x6x4xbf16>
    %37 = vector.shape_cast %36 : vector<1x6x4xbf16> to vector<6x4xbf16>
    %cst_23 = arith.constant dense<0.000000e+00> : vector<8x6xf32>
    %38 = tpu.matmul %33, %35, %cst_23 {dimension_numbers = #tpu.dot_dimension_numbers<[1], [1], [0], [0], [0, 0, 1, 0], [], []>} : vector<8x4xbf16>, vector<6x4xbf16>, vector<8x6xf32> -> vector<8x6xf32>
    %cst_24 = arith.constant dense<0xFF800000> : vector<8xf32>
    %39 = vector.multi_reduction <maximumf>, %38, %cst_24 [1] : vector<8x6xf32> to vector<8xf32>
    %40 = vector.shape_cast %39 : vector<8xf32> to vector<8x1xf32>
    %41 = vector.broadcast %40 : vector<8x1xf32> to vector<8x6xf32>
    %42 = arith.subf %38, %41 : vector<8x6xf32>
    %43 = math.exp %42 : vector<8x6xf32>
    %cst_25 = arith.constant dense<0.000000e+00> : vector<8xf32>
    %44 = vector.multi_reduction <add>, %43, %cst_25 [1] : vector<8x6xf32> to vector<8xf32>
    %45 = vector.shape_cast %44 : vector<8xf32> to vector<8x1xf32>
    %46 = tpu.reciprocal %45 {approx = true} : vector<8x1xf32> -> vector<8x1xf32>
    %47 = vector.broadcast %46 : vector<8x1xf32> to vector<8x6xf32>
    %48 = arith.mulf %43, %47 : vector<8x6xf32>
    %49 = arith.truncf %48 : vector<8x6xf32> to vector<8x6xbf16>
    %cst_26 = arith.constant dense<0.000000e+00> : vector<8x4xf32>
    %50 = tpu.matmul %49, %37, %cst_26 {dimension_numbers = #tpu.dot_dimension_numbers<[1], [0], [0], [1], [0, 0, 1, 1], [], []>} : vector<8x6xbf16>, vector<6x4xbf16>, vector<8x4xf32> -> vector<8x4xf32>
    %51 = arith.truncf %50 : vector<8x4xf32> to vector<8x4xbf16>
    %c0_27 = arith.constant 0 : index
    %c4 = arith.constant 4 : index
    %52 = vector.load %arg12[%c0_27, %c4] : memref<8x32xbf16, #tpu.memory_space<vmem>>, vector<8x4xbf16>
    tpu.vector_store %arg12[%c0_27, %c4], %51 {strides = array<i32>} : memref<8x32xbf16, #tpu.memory_space<vmem>>, vector<8x4xbf16>,
    %53 = vector.extract_strided_slice %12 {offsets = [0, 8], sizes = [8, 4], strides = [1, 1]} : vector<8x32xbf16> to vector<8x4xbf16>
    %c2 = arith.constant 2 : index
    %c0_28 = arith.constant 0 : index
    %c0_29 = arith.constant 0 : index
    %54 = vector.load %arg11[%c2, %c0_28, %c0_29] : memref<16x6x4xbf16, #tpu.memory_space<vmem>>, vector<1x6x4xbf16>
    %55 = vector.shape_cast %54 : vector<1x6x4xbf16> to vector<6x4xbf16>
    %c10 = arith.constant 10 : index
    %c0_30 = arith.constant 0 : index
    %c0_31 = arith.constant 0 : index
    %56 = vector.load %arg11[%c10, %c0_30, %c0_31] : memref<16x6x4xbf16, #tpu.memory_space<vmem>>, vector<1x6x4xbf16>
    %57 = vector.shape_cast %56 : vector<1x6x4xbf16> to vector<6x4xbf16>
    %cst_32 = arith.constant dense<0.000000e+00> : vector<8x6xf32>
    %58 = tpu.matmul %53, %55, %cst_32 {dimension_numbers = #tpu.dot_dimension_numbers<[1], [1], [0], [0], [0, 0, 1, 0], [], []>} : vector<8x4xbf16>, vector<6x4xbf16>, vector<8x6xf32> -> vector<8x6xf32>
    %cst_33 = arith.constant dense<0xFF800000> : vector<8xf32>
    %59 = vector.multi_reduction <maximumf>, %58, %cst_33 [1] : vector<8x6xf32> to vector<8xf32>
    %60 = vector.shape_cast %59 : vector<8xf32> to vector<8x1xf32>
    %61 = vector.broadcast %60 : vector<8x1xf32> to vector<8x6xf32>
    %62 = arith.subf %58, %61 : vector<8x6xf32>
    %63 = math.exp %62 : vector<8x6xf32>
    %cst_34 = arith.constant dense<0.000000e+00> : vector<8xf32>
    %64 = vector.multi_reduction <add>, %63, %cst_34 [1] : vector<8x6xf32> to vector<8xf32>
    %65 = vector.shape_cast %64 : vector<8xf32> to vector<8x1xf32>
    %66 = tpu.reciprocal %65 {approx = true} : vector<8x1xf32> -> vector<8x1xf32>
    %67 = vector.broadcast %66 : vector<8x1xf32> to vector<8x6xf32>
    %68 = arith.mulf %63, %67 : vector<8x6xf32>
    %69 = arith.truncf %68 : vector<8x6xf32> to vector<8x6xbf16>
    %cst_35 = arith.constant dense<0.000000e+00> : vector<8x4xf32>
    %70 = tpu.matmul %69, %57, %cst_35 {dimension_numbers = #tpu.dot_dimension_numbers<[1], [0], [0], [1], [0, 0, 1, 1], [], []>} : vector<8x6xbf16>, vector<6x4xbf16>, vector<8x4xf32> -> vector<8x4xf32>
    %71 = arith.truncf %70 : vector<8x4xf32> to vector<8x4xbf16>
    %c0_36 = arith.constant 0 : index
    %c8_37 = arith.constant 8 : index
    %72 = vector.load %arg12[%c0_36, %c8_37] : memref<8x32xbf16, #tpu.memory_space<vmem>>, vector<8x4xbf16>
    tpu.vector_store %arg12[%c0_36, %c8_37], %71 {strides = array<i32>} : memref<8x32xbf16, #tpu.memory_space<vmem>>, vector<8x4xbf16>,
    %73 = vector.extract_strided_slice %12 {offsets = [0, 12], sizes = [8, 4], strides = [1, 1]} : vector<8x32xbf16> to vector<8x4xbf16>
    %c3 = arith.constant 3 : index
    %c0_38 = arith.constant 0 : index
    %c0_39 = arith.constant 0 : index
    %74 = vector.load %arg11[%c3, %c0_38, %c0_39] : memref<16x6x4xbf16, #tpu.memory_space<vmem>>, vector<1x6x4xbf16>
    %75 = vector.shape_cast %74 : vector<1x6x4xbf16> to vector<6x4xbf16>
    %c11 = arith.constant 11 : index
    %c0_40 = arith.constant 0 : index
    %c0_41 = arith.constant 0 : index
    %76 = vector.load %arg11[%c11, %c0_40, %c0_41] : memref<16x6x4xbf16, #tpu.memory_space<vmem>>, vector<1x6x4xbf16>
    %77 = vector.shape_cast %76 : vector<1x6x4xbf16> to vector<6x4xbf16>
    %cst_42 = arith.constant dense<0.000000e+00> : vector<8x6xf32>
    %78 = tpu.matmul %73, %75, %cst_42 {dimension_numbers = #tpu.dot_dimension_numbers<[1], [1], [0], [0], [0, 0, 1, 0], [], []>} : vector<8x4xbf16>, vector<6x4xbf16>, vector<8x6xf32> -> vector<8x6xf32>
    %cst_43 = arith.constant dense<0xFF800000> : vector<8xf32>
    %79 = vector.multi_reduction <maximumf>, %78, %cst_43 [1] : vector<8x6xf32> to vector<8xf32>
    %80 = vector.shape_cast %79 : vector<8xf32> to vector<8x1xf32>
    %81 = vector.broadcast %80 : vector<8x1xf32> to vector<8x6xf32>
    %82 = arith.subf %78, %81 : vector<8x6xf32>
    %83 = math.exp %82 : vector<8x6xf32>
    %cst_44 = arith.constant dense<0.000000e+00> : vector<8xf32>
    %84 = vector.multi_reduction <add>, %83, %cst_44 [1] : vector<8x6xf32> to vector<8xf32>
    %85 = vector.shape_cast %84 : vector<8xf32> to vector<8x1xf32>
    %86 = tpu.reciprocal %85 {approx = true} : vector<8x1xf32> -> vector<8x1xf32>
    %87 = vector.broadcast %86 : vector<8x1xf32> to vector<8x6xf32>
    %88 = arith.mulf %83, %87 : vector<8x6xf32>
    %89 = arith.truncf %88 : vector<8x6xf32> to vector<8x6xbf16>
    %cst_45 = arith.constant dense<0.000000e+00> : vector<8x4xf32>
    %90 = tpu.matmul %89, %77, %cst_45 {dimension_numbers = #tpu.dot_dimension_numbers<[1], [0], [0], [1], [0, 0, 1, 1], [], []>} : vector<8x6xbf16>, vector<6x4xbf16>, vector<8x4xf32> -> vector<8x4xf32>
    %91 = arith.truncf %90 : vector<8x4xf32> to vector<8x4xbf16>
    %c0_46 = arith.constant 0 : index
    %c12 = arith.constant 12 : index
    %92 = vector.load %arg12[%c0_46, %c12] : memref<8x32xbf16, #tpu.memory_space<vmem>>, vector<8x4xbf16>
    tpu.vector_store %arg12[%c0_46, %c12], %91 {strides = array<i32>} : memref<8x32xbf16, #tpu.memory_space<vmem>>, vector<8x4xbf16>,
    %93 = vector.extract_strided_slice %12 {offsets = [0, 16], sizes = [8, 4], strides = [1, 1]} : vector<8x32xbf16> to vector<8x4xbf16>
    %c4_47 = arith.constant 4 : index
    %c0_48 = arith.constant 0 : index
    %c0_49 = arith.constant 0 : index
    %94 = vector.load %arg11[%c4_47, %c0_48, %c0_49] : memref<16x6x4xbf16, #tpu.memory_space<vmem>>, vector<1x6x4xbf16>
    %95 = vector.shape_cast %94 : vector<1x6x4xbf16> to vector<6x4xbf16>
    %c12_50 = arith.constant 12 : index
    %c0_51 = arith.constant 0 : index
    %c0_52 = arith.constant 0 : index
    %96 = vector.load %arg11[%c12_50, %c0_51, %c0_52] : memref<16x6x4xbf16, #tpu.memory_space<vmem>>, vector<1x6x4xbf16>
    %97 = vector.shape_cast %96 : vector<1x6x4xbf16> to vector<6x4xbf16>
    %cst_53 = arith.constant dense<0.000000e+00> : vector<8x6xf32>
    %98 = tpu.matmul %93, %95, %cst_53 {dimension_numbers = #tpu.dot_dimension_numbers<[1], [1], [0], [0], [0, 0, 1, 0], [], []>} : vector<8x4xbf16>, vector<6x4xbf16>, vector<8x6xf32> -> vector<8x6xf32>
    %cst_54 = arith.constant dense<0xFF800000> : vector<8xf32>
    %99 = vector.multi_reduction <maximumf>, %98, %cst_54 [1] : vector<8x6xf32> to vector<8xf32>
    %100 = vector.shape_cast %99 : vector<8xf32> to vector<8x1xf32>
    %101 = vector.broadcast %100 : vector<8x1xf32> to vector<8x6xf32>
    %102 = arith.subf %98, %101 : vector<8x6xf32>
    %103 = math.exp %102 : vector<8x6xf32>
    %cst_55 = arith.constant dense<0.000000e+00> : vector<8xf32>
    %104 = vector.multi_reduction <add>, %103, %cst_55 [1] : vector<8x6xf32> to vector<8xf32>
    %105 = vector.shape_cast %104 : vector<8xf32> to vector<8x1xf32>
    %106 = tpu.reciprocal %105 {approx = true} : vector<8x1xf32> -> vector<8x1xf32>
    %107 = vector.broadcast %106 : vector<8x1xf32> to vector<8x6xf32>
    %108 = arith.mulf %103, %107 : vector<8x6xf32>
    %109 = arith.truncf %108 : vector<8x6xf32> to vector<8x6xbf16>
    %cst_56 = arith.constant dense<0.000000e+00> : vector<8x4xf32>
    %110 = tpu.matmul %109, %97, %cst_56 {dimension_numbers = #tpu.dot_dimension_numbers<[1], [0], [0], [1], [0, 0, 1, 1], [], []>} : vector<8x6xbf16>, vector<6x4xbf16>, vector<8x4xf32> -> vector<8x4xf32>
    %111 = arith.truncf %110 : vector<8x4xf32> to vector<8x4xbf16>
    %c0_57 = arith.constant 0 : index
    %c16 = arith.constant 16 : index
    %112 = vector.load %arg12[%c0_57, %c16] : memref<8x32xbf16, #tpu.memory_space<vmem>>, vector<8x4xbf16>
    tpu.vector_store %arg12[%c0_57, %c16], %111 {strides = array<i32>} : memref<8x32xbf16, #tpu.memory_space<vmem>>, vector<8x4xbf16>,
    %113 = vector.extract_strided_slice %12 {offsets = [0, 20], sizes = [8, 4], strides = [1, 1]} : vector<8x32xbf16> to vector<8x4xbf16>
    %c5 = arith.constant 5 : index
    %c0_58 = arith.constant 0 : index
    %c0_59 = arith.constant 0 : index
    %114 = vector.load %arg11[%c5, %c0_58, %c0_59] : memref<16x6x4xbf16, #tpu.memory_space<vmem>>, vector<1x6x4xbf16>
    %115 = vector.shape_cast %114 : vector<1x6x4xbf16> to vector<6x4xbf16>
    %c13 = arith.constant 13 : index
    %c0_60 = arith.constant 0 : index
    %c0_61 = arith.constant 0 : index
    %116 = vector.load %arg11[%c13, %c0_60, %c0_61] : memref<16x6x4xbf16, #tpu.memory_space<vmem>>, vector<1x6x4xbf16>
    %117 = vector.shape_cast %116 : vector<1x6x4xbf16> to vector<6x4xbf16>
    %cst_62 = arith.constant dense<0.000000e+00> : vector<8x6xf32>
    %118 = tpu.matmul %113, %115, %cst_62 {dimension_numbers = #tpu.dot_dimension_numbers<[1], [1], [0], [0], [0, 0, 1, 0], [], []>} : vector<8x4xbf16>, vector<6x4xbf16>, vector<8x6xf32> -> vector<8x6xf32>
    %cst_63 = arith.constant dense<0xFF800000> : vector<8xf32>
    %119 = vector.multi_reduction <maximumf>, %118, %cst_63 [1] : vector<8x6xf32> to vector<8xf32>
    %120 = vector.shape_cast %119 : vector<8xf32> to vector<8x1xf32>
    %121 = vector.broadcast %120 : vector<8x1xf32> to vector<8x6xf32>
    %122 = arith.subf %118, %121 : vector<8x6xf32>
    %123 = math.exp %122 : vector<8x6xf32>
    %cst_64 = arith.constant dense<0.000000e+00> : vector<8xf32>
    %124 = vector.multi_reduction <add>, %123, %cst_64 [1] : vector<8x6xf32> to vector<8xf32>
    %125 = vector.shape_cast %124 : vector<8xf32> to vector<8x1xf32>
    %126 = tpu.reciprocal %125 {approx = true} : vector<8x1xf32> -> vector<8x1xf32>
    %127 = vector.broadcast %126 : vector<8x1xf32> to vector<8x6xf32>
    %128 = arith.mulf %123, %127 : vector<8x6xf32>
    %129 = arith.truncf %128 : vector<8x6xf32> to vector<8x6xbf16>
    %cst_65 = arith.constant dense<0.000000e+00> : vector<8x4xf32>
    %130 = tpu.matmul %129, %117, %cst_65 {dimension_numbers = #tpu.dot_dimension_numbers<[1], [0], [0], [1], [0, 0, 1, 1], [], []>} : vector<8x6xbf16>, vector<6x4xbf16>, vector<8x4xf32> -> vector<8x4xf32>
    %131 = arith.truncf %130 : vector<8x4xf32> to vector<8x4xbf16>
    %c0_66 = arith.constant 0 : index
    %c20 = arith.constant 20 : index
    %132 = vector.load %arg12[%c0_66, %c20] : memref<8x32xbf16, #tpu.memory_space<vmem>>, vector<8x4xbf16>
    tpu.vector_store %arg12[%c0_66, %c20], %131 {strides = array<i32>} : memref<8x32xbf16, #tpu.memory_space<vmem>>, vector<8x4xbf16>,
    %133 = vector.extract_strided_slice %12 {offsets = [0, 24], sizes = [8, 4], strides = [1, 1]} : vector<8x32xbf16> to vector<8x4xbf16>
    %c6 = arith.constant 6 : index
    %c0_67 = arith.constant 0 : index
    %c0_68 = arith.constant 0 : index
    %134 = vector.load %arg11[%c6, %c0_67, %c0_68] : memref<16x6x4xbf16, #tpu.memory_space<vmem>>, vector<1x6x4xbf16>
    %135 = vector.shape_cast %134 : vector<1x6x4xbf16> to vector<6x4xbf16>
    %c14 = arith.constant 14 : index
    %c0_69 = arith.constant 0 : index
    %c0_70 = arith.constant 0 : index
    %136 = vector.load %arg11[%c14, %c0_69, %c0_70] : memref<16x6x4xbf16, #tpu.memory_space<vmem>>, vector<1x6x4xbf16>
    %137 = vector.shape_cast %136 : vector<1x6x4xbf16> to vector<6x4xbf16>
    %cst_71 = arith.constant dense<0.000000e+00> : vector<8x6xf32>
    %138 = tpu.matmul %133, %135, %cst_71 {dimension_numbers = #tpu.dot_dimension_numbers<[1], [1], [0], [0], [0, 0, 1, 0], [], []>} : vector<8x4xbf16>, vector<6x4xbf16>, vector<8x6xf32> -> vector<8x6xf32>
    %cst_72 = arith.constant dense<0xFF800000> : vector<8xf32>
    %139 = vector.multi_reduction <maximumf>, %138, %cst_72 [1] : vector<8x6xf32> to vector<8xf32>
    %140 = vector.shape_cast %139 : vector<8xf32> to vector<8x1xf32>
    %141 = vector.broadcast %140 : vector<8x1xf32> to vector<8x6xf32>
    %142 = arith.subf %138, %141 : vector<8x6xf32>
    %143 = math.exp %142 : vector<8x6xf32>
    %cst_73 = arith.constant dense<0.000000e+00> : vector<8xf32>
    %144 = vector.multi_reduction <add>, %143, %cst_73 [1] : vector<8x6xf32> to vector<8xf32>
    %145 = vector.shape_cast %144 : vector<8xf32> to vector<8x1xf32>
    %146 = tpu.reciprocal %145 {approx = true} : vector<8x1xf32> -> vector<8x1xf32>
    %147 = vector.broadcast %146 : vector<8x1xf32> to vector<8x6xf32>
    %148 = arith.mulf %143, %147 : vector<8x6xf32>
    %149 = arith.truncf %148 : vector<8x6xf32> to vector<8x6xbf16>
    %cst_74 = arith.constant dense<0.000000e+00> : vector<8x4xf32>
    %150 = tpu.matmul %149, %137, %cst_74 {dimension_numbers = #tpu.dot_dimension_numbers<[1], [0], [0], [1], [0, 0, 1, 1], [], []>} : vector<8x6xbf16>, vector<6x4xbf16>, vector<8x4xf32> -> vector<8x4xf32>
    %151 = arith.truncf %150 : vector<8x4xf32> to vector<8x4xbf16>
    %c0_75 = arith.constant 0 : index
    %c24 = arith.constant 24 : index
    %152 = vector.load %arg12[%c0_75, %c24] : memref<8x32xbf16, #tpu.memory_space<vmem>>, vector<8x4xbf16>
    tpu.vector_store %arg12[%c0_75, %c24], %151 {strides = array<i32>} : memref<8x32xbf16, #tpu.memory_space<vmem>>, vector<8x4xbf16>,
    %153 = vector.extract_strided_slice %12 {offsets = [0, 28], sizes = [8, 4], strides = [1, 1]} : vector<8x32xbf16> to vector<8x4xbf16>
    %c7 = arith.constant 7 : index
    %c0_76 = arith.constant 0 : index
    %c0_77 = arith.constant 0 : index
    %154 = vector.load %arg11[%c7, %c0_76, %c0_77] : memref<16x6x4xbf16, #tpu.memory_space<vmem>>, vector<1x6x4xbf16>
    %155 = vector.shape_cast %154 : vector<1x6x4xbf16> to vector<6x4xbf16>
    %c15 = arith.constant 15 : index
    %c0_78 = arith.constant 0 : index
    %c0_79 = arith.constant 0 : index
    %156 = vector.load %arg11[%c15, %c0_78, %c0_79] : memref<16x6x4xbf16, #tpu.memory_space<vmem>>, vector<1x6x4xbf16>
    %157 = vector.shape_cast %156 : vector<1x6x4xbf16> to vector<6x4xbf16>
    %cst_80 = arith.constant dense<0.000000e+00> : vector<8x6xf32>
    %158 = tpu.matmul %153, %155, %cst_80 {dimension_numbers = #tpu.dot_dimension_numbers<[1], [1], [0], [0], [0, 0, 1, 0], [], []>} : vector<8x4xbf16>, vector<6x4xbf16>, vector<8x6xf32> -> vector<8x6xf32>
    %cst_81 = arith.constant dense<0xFF800000> : vector<8xf32>
    %159 = vector.multi_reduction <maximumf>, %158, %cst_81 [1] : vector<8x6xf32> to vector<8xf32>
    %160 = vector.shape_cast %159 : vector<8xf32> to vector<8x1xf32>
    %161 = vector.broadcast %160 : vector<8x1xf32> to vector<8x6xf32>
    %162 = arith.subf %158, %161 : vector<8x6xf32>
    %163 = math.exp %162 : vector<8x6xf32>
    %cst_82 = arith.constant dense<0.000000e+00> : vector<8xf32>
    %164 = vector.multi_reduction <add>, %163, %cst_82 [1] : vector<8x6xf32> to vector<8xf32>
    %165 = vector.shape_cast %164 : vector<8xf32> to vector<8x1xf32>
    %166 = tpu.reciprocal %165 {approx = true} : vector<8x1xf32> -> vector<8x1xf32>
    %167 = vector.broadcast %166 : vector<8x1xf32> to vector<8x6xf32>
    %168 = arith.mulf %163, %167 : vector<8x6xf32>
    %169 = arith.truncf %168 : vector<8x6xf32> to vector<8x6xbf16>
    %cst_83 = arith.constant dense<0.000000e+00> : vector<8x4xf32>
    %170 = tpu.matmul %169, %157, %cst_83 {dimension_numbers = #tpu.dot_dimension_numbers<[1], [0], [0], [1], [0, 0, 1, 1], [], []>} : vector<8x6xbf16>, vector<6x4xbf16>, vector<8x4xf32> -> vector<8x4xf32>
    %171 = arith.truncf %170 : vector<8x4xf32> to vector<8x4xbf16>
    %c0_84 = arith.constant 0 : index
    %c28 = arith.constant 28 : index
    %172 = vector.load %arg12[%c0_84, %c28] : memref<8x32xbf16, #tpu.memory_space<vmem>>, vector<8x4xbf16>
    tpu.vector_store %arg12[%c0_84, %c28], %171 {strides = array<i32>} : memref<8x32xbf16, #tpu.memory_space<vmem>>, vector<8x4xbf16>,
    %c0_85 = arith.constant 0 : index
    %c0_86 = arith.constant 0 : index
    %173 = vector.load %arg12[%c0_85, %c0_86] : memref<8x32xbf16, #tpu.memory_space<vmem>>, vector<8x32xbf16>
    %c0_87 = arith.constant 0 : index
    %c0_88 = arith.constant 0 : index
    %174 = vector.load %arg8[%c0_87, %c0_88] : memref<32x32xbf16, #tpu.memory_space<vmem>>, vector<32x32xbf16>
    %cst_89 = arith.constant dense<0.000000e+00> : vector<8x32xf32>
    %175 = tpu.matmul %173, %174, %cst_89 {dimension_numbers = #tpu.dot_dimension_numbers<[1], [0], [0], [1], [0, 0, 1, 1], [], []>} : vector<8x32xbf16>, vector<32x32xbf16>, vector<8x32xf32> -> vector<8x32xf32>
    %c0_90 = arith.constant 0 : index
    %c0_91 = arith.constant 0 : index
    %176 = vector.load %arg9[%c0_90, %c0_91] : memref<1x32xf32, #tpu.memory_space<vmem>>, vector<1x32xf32>
    %177 = vector.broadcast %176 : vector<1x32xf32> to vector<8x32xf32>
    %178 = arith.addf %175, %177 : vector<8x32xf32>
    %c0_92 = arith.constant 0 : index
    %c0_93 = arith.constant 0 : index
    %c0_94 = arith.constant 0 : index
    %179 = vector.load %arg10[%c0_92, %c0_93, %c0_94] : memref<1x8x32xf32, #tpu.memory_space<vmem>>, vector<1x8x32xf32>
    %180 = vector.shape_cast %179 : vector<1x8x32xf32> to vector<8x32xf32>
    %181 = vector.shape_cast %178 : vector<8x32xf32> to vector<1x8x32xf32>
    tpu.vector_store %arg10[%c0_92, %c0_93, %c0_94], %181 {strides = array<i32>} : memref<1x8x32xf32, #tpu.memory_space<vmem>>, vector<1x8x32xf32>,
    return
  }
  func.func @transform_0(%arg0: i32, %arg1: i32) -> (i32, i32, i32) {
    %c0_i32 = arith.constant 0 : i32
    %c0_i32_0 = arith.constant 0 : i32
    return %arg0, %arg1, %c0_i32 : i32, i32, i32
  }
  func.func @transform_1(%arg0: i32, %arg1: i32) -> (i32, i32, i32) {
    %c0_i32 = arith.constant 0 : i32
    %c0_i32_0 = arith.constant 0 : i32
    %c0_i32_1 = arith.constant 0 : i32
    return %arg0, %c0_i32, %c0_i32_0 : i32, i32, i32
  }
  func.func @transform_2(%arg0: i32, %arg1: i32) -> (i32, i32) {
    %c0_i32 = arith.constant 0 : i32
    %c0_i32_0 = arith.constant 0 : i32
    %c0_i32_1 = arith.constant 0 : i32
    return %c0_i32, %c0_i32_0 : i32, i32
  }
  func.func @transform_3(%arg0: i32, %arg1: i32) -> (i32, i32) {
    %c0_i32 = arith.constant 0 : i32
    %c0_i32_0 = arith.constant 0 : i32
    %c0_i32_1 = arith.constant 0 : i32
    return %c0_i32, %c0_i32_0 : i32, i32
  }
  func.func @transform_4(%arg0: i32, %arg1: i32) -> (i32, i32) {
    %c0_i32 = arith.constant 0 : i32
    %c0_i32_0 = arith.constant 0 : i32
    %c0_i32_1 = arith.constant 0 : i32
    return %c0_i32, %c0_i32_0 : i32, i32
  }
  func.func @transform_5(%arg0: i32, %arg1: i32) -> (i32, i32) {
    %c0_i32 = arith.constant 0 : i32
    %c0_i32_0 = arith.constant 0 : i32
    %c0_i32_1 = arith.constant 0 : i32
    return %c0_i32, %c0_i32_0 : i32, i32
  }
  func.func @transform_6(%arg0: i32, %arg1: i32) -> (i32, i32) {
    %c0_i32 = arith.constant 0 : i32
    %c0_i32_0 = arith.constant 0 : i32
    %c0_i32_1 = arith.constant 0 : i32
    return %c0_i32, %c0_i32_0 : i32, i32
  }
  func.func @transform_7(%arg0: i32, %arg1: i32) -> (i32, i32) {
    %c0_i32 = arith.constant 0 : i32
    %c0_i32_0 = arith.constant 0 : i32
    %c0_i32_1 = arith.constant 0 : i32
    return %c0_i32, %c0_i32_0 : i32, i32
  }
  func.func @transform_8(%arg0: i32, %arg1: i32) -> (i32, i32, i32) {
    %c0_i32 = arith.constant 0 : i32
    %c0_i32_0 = arith.constant 0 : i32
    return %arg0, %arg1, %c0_i32 : i32, i32, i32
  }
}

</mosaic_0001>

<llo_original>
// kernel: tpu_custom_call.1
$region0: #{tpu_custom_call.1}
  #allocation0 [shape = 'u32[]', space=smem, size = 0x4, offset = 0x4, fixed_abs, tag = 'smem constant byte address 0x4 - core index']
  #allocation1 [shape = 'u32[144,128]{1,0:T(1,128)}', space=vmem, size = 0x12000, scoped, tag = 'internal scratch']
  #allocation2 [shape = 'bf16[16,6,4]{2,1,0:T(8,128)(2,1)}', space=vmem, size = 0x8000, scoped, tag = 'scratch operand']
  #allocation3 [shape = 'bf16[8,32]{1,0:T(8,128)(2,1)}', space=vmem, size = 0x800, scoped, tag = 'scratch operand']
  %s0 = inlined_call_operand.hbm [shape: bf16[2,8,32], index: 0, kind: input, shape index: {}]
  %s1 = inlined_call_operand.hbm [shape: bf16[2,6,32], index: 1, kind: input, shape index: {}]
  %s2 = inlined_call_operand.hbm [shape: bf16[32,32], index: 2, kind: input, shape index: {}]
  %s3 = inlined_call_operand.hbm [shape: f32[1,32], index: 3, kind: input, shape index: {}]
  %s4 = inlined_call_operand.hbm [shape: bf16[32,64], index: 4, kind: input, shape index: {}]
  %s5 = inlined_call_operand.hbm [shape: f32[1,64], index: 5, kind: input, shape index: {}]
  %s6 = inlined_call_operand.hbm [shape: bf16[32,32], index: 6, kind: input, shape index: {}]
  %s7 = inlined_call_operand.hbm [shape: f32[1,32], index: 7, kind: input, shape index: {}]
  %s8 = inlined_call_operand.hbm [shape: f32[2,8,32], index: 8, kind: output, shape index: {}]
  %s9 = sld [smem:[#allocation0]]
  $region101: #{tpu_custom_call.1} parent=0
    _
  %s11 = ssub.s32 1, %s9
  %s12 = scalar_select 0, %s11, %s9
  $region1: #{tpu_custom_call.1} parent=0
    #allocation4 [shape = 'u8[4096]{0}', space=vmem, size = 0x1000, scoped, tag = 'input window, operand 0']
    #allocation5 [shape = 's32[2]{0}', space=sflag, size = 0x8, scoped, tag = 'scoped memory for tpu_custom_call.1']
    #allocation6 [shape = 's32[2]{0}', space=sflag, size = 0x8, scoped, tag = 'scoped memory for tpu_custom_call.1']
    #allocation7 [shape = 'u8[4096]{0}', space=vmem, size = 0x1000, scoped, tag = 'input window, operand 1']
    #allocation8 [shape = 's32[2]{0}', space=sflag, size = 0x8, scoped, tag = 'scoped memory for tpu_custom_call.1']
    #allocation9 [shape = 'u8[8192]{0}', space=vmem, size = 0x2000, scoped, tag = 'input window, operand 2, single buffered']
    #allocation10 [shape = 'u8[512]{0}', space=vmem, size = 0x400, scoped, tag = 'input window, operand 3, single buffered']
    #allocation11 [shape = 's32[1]{0}', space=sflag, size = 0x4, scoped, tag = 'scoped memory for tpu_custom_call.1']
    #allocation12 [shape = 'u8[8192]{0}', space=vmem, size = 0x2000, scoped, tag = 'input window, operand 4, single buffered']
    #allocation13 [shape = 'u8[512]{0}', space=vmem, size = 0x400, scoped, tag = 'input window, operand 5, single buffered']
    #allocation14 [shape = 's32[1]{0}', space=sflag, size = 0x4, scoped, tag = 'scoped memory for tpu_custom_call.1']
    #allocation15 [shape = 'u8[8192]{0}', space=vmem, size = 0x2000, scoped, tag = 'input window, operand 6, single buffered']
    #allocation16 [shape = 'u8[512]{0}', space=vmem, size = 0x400, scoped, tag = 'input window, operand 7, single buffered']
    #allocation17 [shape = 's32[1]{0}', space=sflag, size = 0x4, scoped, tag = 'scoped memory for tpu_custom_call.1']
    #allocation18 [shape = 'u8[8192]{0}', space=vmem, size = 0x2000, scoped, tag = 'output window, operand 0']
    %13 = vsyncpa [#allocation5], 0
    %s14 = scalar_lea.sflag [#allocation5], 1
    %15 = vsyncpa %s14, 0
    %16 = vsyncpa [#allocation8], 0
    %s17 = scalar_lea.sflag [#allocation8], 1
    %18 = vsyncpa %s17, 0
    %19 = vsyncpa [#allocation11], 0
    %20 = vsyncpa [#allocation14], 0
    %21 = vsyncpa [#allocation17], 0
    %22 = vsyncpa [#allocation6], 0
    %s23 = scalar_lea.sflag [#allocation6], 1
    %24 = vsyncpa %s23, 0
    loop: start=0, step=1, limit=4
    $region2: #{tpu_custom_call.1} parent=1 // loop_pre_header
      _
    $region3: #{tpu_custom_call.1} parent=1 // loop_header
      %s26 = sphi 0, %s30
      %p27 = scmp.ge.s32.totalorder %s26, 4
      %s33 = sphi 0, %s45
      %s34 = sphi 0, %s41
      %s35 = sphi 0, %s33
      %s36 = sphi 0, %s34
      %s37 = sphi 0, %s35
      %s38 = sphi 0, %s36
      %s50 = sphi 0, %s52
      %s53 = sphi 0, %s50
      %s54 = sphi 0, %s53
      %s70 = sphi 0, %s54
      %s76 = sphi 0, %s78
      %s79 = sphi 0, %s76
      %s80 = sphi 0, %s79
      %s96 = sphi 0, %s80
      %s100 = sphi 0, %s100
      %s102 = sphi 0, %s100
      %s103 = sphi 0, %s102
      %s117 = sphi 0, %s103
      %s121 = sphi 0, %s121
      %s123 = sphi 0, %s121
      %s124 = sphi 0, %s123
      %s138 = sphi 0, %s124
      %s142 = sphi 0, %s142
      %s144 = sphi 0, %s142
      %s145 = sphi 0, %s144
      %s159 = sphi 0, %s145
      %s163 = sphi 0, %s163
      %s165 = sphi 0, %s163
      %s166 = sphi 0, %s165
      %s180 = sphi 0, %s166
      %s184 = sphi 0, %s184
      %s186 = sphi 0, %s184
      %s187 = sphi 0, %s186
      %s201 = sphi 0, %s187
      %s205 = sphi 0, %s205
      %s207 = sphi 0, %s205
      %s208 = sphi 0, %s207
      %s222 = sphi 0, %s208
      %s230 = sphi 0, %s232
      %s233 = sphi 0, %s230
      %s234 = sphi 0, %s233
      %s250 = sphi 0, %s234
    $region4: #{tpu_custom_call.1} parent=1 // loop_header_branch
      %29 = sbr.rel (%p27) target = $region8
    $region5: #{tpu_custom_call.1} parent=1 // loop_body
      %s31 = ssub.s32 %s26, 1
      %s32 = ssub.s32 %s26, 2
      %s39 = sadd.s32 1, %s34
      %p40 = scmp.ge.s32.totalorder %s39, 1
      %s41 = scalar_select %p40, 0, %s39
      %s42 = sadd.s32 1, %s33
      %s43 = scalar_select %p40, %s42, %s33
      %p44 = scmp.ge.s32.totalorder %s43, 2
      %s45 = scalar_select %p44, 0, %s43
      %s46 = ssub.s32 %s33, %s45
      %s47 = ssub.s32 %s34, %s41
      %s48 = sor.u32 %s46, %s47
      %p49 = scmp.eq.s32.totalorder %s48, 0
      %s51 = sadd.s32 %s50, 1
      %s52 = scalar_select %p49, %s50, %s51
      %p55 = pneg %p49
      %p56 = scmp.eq.s32.totalorder %s26, 1
      %p57 = por %p55, %p56
      %p58 = scmp.ne.s32.totalorder %s50, %s53
      %p59 = scmp.eq.s32.totalorder %s26, 0
      %p60 = por %p58, %p59
      %p61 = scmp.ne.s32.totalorder %s50, %s53
      %p62 = scmp.eq.s32.totalorder %s31, 1
      %p63 = por %p61, %p62
      %p64 = scmp.ne.s32.totalorder %s53, %s54
      %p65 = scmp.eq.s32.totalorder %s31, 0
      %p66 = por %p64, %p65
      %p67 = scmp.ne.s32.totalorder %s53, %s54
      %p68 = scmp.eq.s32.totalorder %s32, 1
      %p69 = por %p67, %p68
      %p71 = scmp.ne.s32.totalorder %s54, %s70
      %p72 = scmp.eq.s32.totalorder %s32, 0
      %p73 = por %p71, %p72
      %s74 = ssub.s32 %s33, %s45
      %p75 = scmp.eq.s32.totalorder %s74, 0
      %s77 = sadd.s32 %s76, 1
      %s78 = scalar_select %p75, %s76, %s77
      %p81 = pneg %p75
      %p82 = scmp.eq.s32.totalorder %s26, 1
      %p83 = por %p81, %p82
      %p84 = scmp.ne.s32.totalorder %s76, %s79
      %p85 = scmp.eq.s32.totalorder %s26, 0
      %p86 = por %p84, %p85
      %p87 = scmp.ne.s32.totalorder %s76, %s79
      %p88 = scmp.eq.s32.totalorder %s31, 1
      %p89 = por %p87, %p88
      %p90 = scmp.ne.s32.totalorder %s79, %s80
      %p91 = scmp.eq.s32.totalorder %s31, 0
      %p92 = por %p90, %p91
      %p93 = scmp.ne.s32.totalorder %s79, %s80
      %p94 = scmp.eq.s32.totalorder %s32, 1
      %p95 = por %p93, %p94
      %p97 = scmp.ne.s32.totalorder %s80, %s96
      %p98 = scmp.eq.s32.totalorder %s32, 0
      %p99 = por %p97, %p98
      %s101 = sadd.s32 %s100, 1
      %p104 = scmp.eq.s32.totalorder %s26, 1
      %p105 = scmp.ne.s32.totalorder %s100, %s102
      %p106 = scmp.eq.s32.totalorder %s26, 0
      %p107 = por %p105, %p106
      %p108 = scmp.ne.s32.totalorder %s100, %s102
      %p109 = scmp.eq.s32.totalorder %s31, 1
      %p110 = por %p108, %p109
      %p111 = scmp.ne.s32.totalorder %s102, %s103
      %p112 = scmp.eq.s32.totalorder %s31, 0
      %p113 = por %p111, %p112
      %p114 = scmp.ne.s32.totalorder %s102, %s103
      %p115 = scmp.eq.s32.totalorder %s32, 1
      %p116 = por %p114, %p115
      %p118 = scmp.ne.s32.totalorder %s103, %s117
      %p119 = scmp.eq.s32.totalorder %s32, 0
      %p120 = por %p118, %p119
      %s122 = sadd.s32 %s121, 1
      %p125 = scmp.eq.s32.totalorder %s26, 1
      %p126 = scmp.ne.s32.totalorder %s121, %s123
      %p127 = scmp.eq.s32.totalorder %s26, 0
      %p128 = por %p126, %p127
      %p129 = scmp.ne.s32.totalorder %s121, %s123
      %p130 = scmp.eq.s32.totalorder %s31, 1
      %p131 = por %p129, %p130
      %p132 = scmp.ne.s32.totalorder %s123, %s124
      %p133 = scmp.eq.s32.totalorder %s31, 0
      %p134 = por %p132, %p133
      %p135 = scmp.ne.s32.totalorder %s123, %s124
      %p136 = scmp.eq.s32.totalorder %s32, 1
      %p137 = por %p135, %p136
      %p139 = scmp.ne.s32.totalorder %s124, %s138
      %p140 = scmp.eq.s32.totalorder %s32, 0
      %p141 = por %p139, %p140
      %s143 = sadd.s32 %s142, 1
      %p146 = scmp.eq.s32.totalorder %s26, 1
      %p147 = scmp.ne.s32.totalorder %s142, %s144
      %p148 = scmp.eq.s32.totalorder %s26, 0
      %p149 = por %p147, %p148
      %p150 = scmp.ne.s32.totalorder %s142, %s144
      %p151 = scmp.eq.s32.totalorder %s31, 1
      %p152 = por %p150, %p151
      %p153 = scmp.ne.s32.totalorder %s144, %s145
      %p154 = scmp.eq.s32.totalorder %s31, 0
      %p155 = por %p153, %p154
      %p156 = scmp.ne.s32.totalorder %s144, %s145
      %p157 = scmp.eq.s32.totalorder %s32, 1
      %p158 = por %p156, %p157
      %p160 = scmp.ne.s32.totalorder %s145, %s159
      %p161 = scmp.eq.s32.totalorder %s32, 0
      %p162 = por %p160, %p161
      %s164 = sadd.s32 %s163, 1
      %p167 = scmp.eq.s32.totalorder %s26, 1
      %p168 = scmp.ne.s32.totalorder %s163, %s165
      %p169 = scmp.eq.s32.totalorder %s26, 0
      %p170 = por %p168, %p169
      %p171 = scmp.ne.s32.totalorder %s163, %s165
      %p172 = scmp.eq.s32.totalorder %s31, 1
      %p173 = por %p171, %p172
      %p174 = scmp.ne.s32.totalorder %s165, %s166
      %p175 = scmp.eq.s32.totalorder %s31, 0
      %p176 = por %p174, %p175
      %p177 = scmp.ne.s32.totalorder %s165, %s166
      %p178 = scmp.eq.s32.totalorder %s32, 1
      %p179 = por %p177, %p178
      %p181 = scmp.ne.s32.totalorder %s166, %s180
      %p182 = scmp.eq.s32.totalorder %s32, 0
      %p183 = por %p181, %p182
      %s185 = sadd.s32 %s184, 1
      %p188 = scmp.eq.s32.totalorder %s26, 1
      %p189 = scmp.ne.s32.totalorder %s184, %s186
      %p190 = scmp.eq.s32.totalorder %s26, 0
      %p191 = por %p189, %p190
      %p192 = scmp.ne.s32.totalorder %s184, %s186
      %p193 = scmp.eq.s32.totalorder %s31, 1
      %p194 = por %p192, %p193
      %p195 = scmp.ne.s32.totalorder %s186, %s187
      %p196 = scmp.eq.s32.totalorder %s31, 0
      %p197 = por %p195, %p196
      %p198 = scmp.ne.s32.totalorder %s186, %s187
      %p199 = scmp.eq.s32.totalorder %s32, 1
      %p200 = por %p198, %p199
      %p202 = scmp.ne.s32.totalorder %s187, %s201
      %p203 = scmp.eq.s32.totalorder %s32, 0
      %p204 = por %p202, %p203
      %s206 = sadd.s32 %s205, 1
      %p209 = scmp.eq.s32.totalorder %s26, 1
      %p210 = scmp.ne.s32.totalorder %s205, %s207
      %p211 = scmp.eq.s32.totalorder %s26, 0
      %p212 = por %p210, %p211
      %p213 = scmp.ne.s32.totalorder %s205, %s207
      %p214 = scmp.eq.s32.totalorder %s31, 1
      %p215 = por %p213, %p214
      %p216 = scmp.ne.s32.totalorder %s207, %s208
      %p217 = scmp.eq.s32.totalorder %s31, 0
      %p218 = por %p216, %p217
      %p219 = scmp.ne.s32.totalorder %s207, %s208
      %p220 = scmp.eq.s32.totalorder %s32, 1
      %p221 = por %p219, %p220
      %p223 = scmp.ne.s32.totalorder %s208, %s222
      %p224 = scmp.eq.s32.totalorder %s32, 0
      %p225 = por %p223, %p224
      %s226 = ssub.s32 %s33, %s45
      %s227 = ssub.s32 %s34, %s41
      %s228 = sor.u32 %s226, %s227
      %p229 = scmp.eq.s32.totalorder %s228, 0
      %s231 = sadd.s32 %s230, 1
      %s232 = scalar_select %p229, %s230, %s231
      %p235 = pneg %p229
      %p236 = scmp.eq.s32.totalorder %s26, 1
      %p237 = por %p235, %p236
      %p238 = scmp.ne.s32.totalorder %s230, %s233
      %p239 = scmp.eq.s32.totalorder %s26, 0
      %p240 = por %p238, %p239
      %p241 = scmp.ne.s32.totalorder %s230, %s233
      %p242 = scmp.eq.s32.totalorder %s31, 1
      %p243 = por %p241, %p242
      %p244 = scmp.ne.s32.totalorder %s233, %s234
      %p245 = scmp.eq.s32.totalorder %s31, 0
      %p246 = por %p244, %p245
      %p247 = scmp.ne.s32.totalorder %s233, %s234
      %p248 = scmp.eq.s32.totalorder %s32, 1
      %p249 = por %p247, %p248
      %p251 = scmp.ne.s32.totalorder %s234, %s250
      %p252 = scmp.eq.s32.totalorder %s32, 0
      %p253 = por %p251, %p252
      %p254 = scmp.le.s32.totalorder 1, %s26
      %p255 = scmp.lt.s32.totalorder %s26, 3
      %p256 = pnand %p254, %p255
      %p257 = pneg %p256
      // Predicated region
      $region9: #{tpu_custom_call.1} parent=5 // pred_check
        _
      $region10: #{tpu_custom_call.1} parent=5 // pred_check_branch
        %259 = sbr.rel (%p256) target = $region12
      $region11: #{tpu_custom_call.1} parent=5 // pred_region
        %s260 = ssub.s32 %s26, 1
        // Predicated region
        $region13: #{tpu_custom_call.1} parent=11 // pred_check
          %p261 = pneg %p113
        $region14: #{tpu_custom_call.1} parent=11 // pred_check_branch
          %263 = sbr.rel (%p261) target = $region16
        $region15: #{tpu_custom_call.1} parent=11 // pred_region
          %s265 = ssub.s32 256, 256
          %266 = vsyncadd [#allocation8], %s265
          %s267 = sshll.u32 [#allocation9], 4
          %s268 = int_to_ptr.vmem [resolvable:$true] %s267
          %273 = dma.hbm_to_vmem [thread:$0]  %s2, 256, %s268, [#allocation8], 64, 64, 4
        $region16: #{tpu_custom_call.1} parent=11 // pred_fallthru
          _
        // Predicated region
        $region17: #{tpu_custom_call.1} parent=11 // pred_check
          %p274 = pneg %p134
        $region18: #{tpu_custom_call.1} parent=11 // pred_check_branch
          %276 = sbr.rel (%p274) target = $region20
        $region19: #{tpu_custom_call.1} parent=11 // pred_region
          %s278 = ssub.s32 16, 16
          %279 = vsyncadd [#allocation11], %s278
          %s281 = sshll.u32 [#allocation10], 4
          %s282 = int_to_ptr.vmem [resolvable:$true] %s281
          %284 = dma.hbm_to_vmem [thread:$0]  %s3, 16, %s282, [#allocation11]
        $region20: #{tpu_custom_call.1} parent=11 // pred_fallthru
          _
        // Predicated region
        $region21: #{tpu_custom_call.1} parent=11 // pred_check
          %p285 = pneg %p155
        $region22: #{tpu_custom_call.1} parent=11 // pred_check_branch
          %287 = sbr.rel (%p285) target = $region24
        $region23: #{tpu_custom_call.1} parent=11 // pred_region
          %s289 = ssub.s32 256, 256
          %290 = vsyncadd [#allocation11], %s289
          %s291 = sshll.u32 [#allocation12], 4
          %s292 = int_to_ptr.vmem [resolvable:$true] %s291
          %297 = dma.hbm_to_vmem [thread:$0]  %s4, 256, %s292, [#allocation11], 64, 64, 4
        $region24: #{tpu_custom_call.1} parent=11 // pred_fallthru
          _
        // Predicated region
        $region25: #{tpu_custom_call.1} parent=11 // pred_check
          %p298 = pneg %p176
        $region26: #{tpu_custom_call.1} parent=11 // pred_check_branch
          %300 = sbr.rel (%p298) target = $region28
        $region27: #{tpu_custom_call.1} parent=11 // pred_region
          %s302 = ssub.s32 16, 16
          %303 = vsyncadd [#allocation14], %s302
          %s305 = sshll.u32 [#allocation13], 4
          %s306 = int_to_ptr.vmem [resolvable:$true] %s305
          %308 = dma.hbm_to_vmem [thread:$0]  %s5, 16, %s306, [#allocation14]
        $region28: #{tpu_custom_call.1} parent=11 // pred_fallthru
          _
        // Predicated region
        $region29: #{tpu_custom_call.1} parent=11 // pred_check
          %p309 = pneg %p197
        $region30: #{tpu_custom_call.1} parent=11 // pred_check_branch
          %311 = sbr.rel (%p309) target = $region32
        $region31: #{tpu_custom_call.1} parent=11 // pred_region
          %s313 = ssub.s32 256, 256
          %314 = vsyncadd [#allocation14], %s313
          %s315 = sshll.u32 [#allocation15], 4
          %s316 = int_to_ptr.vmem [resolvable:$true] %s315
          %321 = dma.hbm_to_vmem [thread:$0]  %s6, 256, %s316, [#allocation14], 64, 64, 4
        $region32: #{tpu_custom_call.1} parent=11 // pred_fallthru
          _
        // Predicated region
        $region33: #{tpu_custom_call.1} parent=11 // pred_check
          %p322 = pneg %p218
        $region34: #{tpu_custom_call.1} parent=11 // pred_check_branch
          %324 = sbr.rel (%p322) target = $region36
        $region35: #{tpu_custom_call.1} parent=11 // pred_region
          %s326 = ssub.s32 16, 16
          %327 = vsyncadd [#allocation17], %s326
          %s329 = sshll.u32 [#allocation16], 4
          %s330 = int_to_ptr.vmem [resolvable:$true] %s329
          %332 = dma.hbm_to_vmem [thread:$0]  %s7, 16, %s330, [#allocation17]
        $region36: #{tpu_custom_call.1} parent=11 // pred_fallthru
          _
      $region12: #{tpu_custom_call.1} parent=5 // pred_fallthru
        _
      %p333 = scmp.lt.s32.totalorder %s26, 2
      // Predicated region
      $region37: #{tpu_custom_call.1} parent=5 // pred_check
        %p334 = pneg %p333
      $region38: #{tpu_custom_call.1} parent=5 // pred_check_branch
        %336 = sbr.rel (%p334) target = $region40
      $region39: #{tpu_custom_call.1} parent=5 // pred_region
        // Predicated region
        $region41: #{tpu_custom_call.1} parent=39 // pred_check
          %p337 = pneg %p60
        $region42: #{tpu_custom_call.1} parent=39 // pred_check_branch
          %339 = sbr.rel (%p337) target = $region44
        $region43: #{tpu_custom_call.1} parent=39 // pred_region
          %s340 = sand.u32 %s50, 1
          %s341 = scalar_lea.sflag [#allocation5], %s340
          %s342 = sand.u32 %s50, 1
          %s343 = smul.addr %s342, 4
          %s344 = scalar_lea.vmem [#allocation4], %s343
          %s346 = ssub.s32 64, 64
          %347 = vsyncadd %s341, %s346
          %s348 = sadd.s32 %s34, %s33
          %s349 = smul.addr %s348, 64
          %s350 = scalar_lea.hbm %s0, %s349
          %s352 = sshll.u32 %s344, 4
          %s353 = int_to_ptr.vmem [resolvable:$true] %s352
          %355 = dma.hbm_to_vmem [thread:$0]  %s350, 64, %s353, %s341
        $region44: #{tpu_custom_call.1} parent=39 // pred_fallthru
          _
        // Predicated region
        $region45: #{tpu_custom_call.1} parent=39 // pred_check
          %p356 = pneg %p86
        $region46: #{tpu_custom_call.1} parent=39 // pred_check_branch
          %358 = sbr.rel (%p356) target = $region48
        $region47: #{tpu_custom_call.1} parent=39 // pred_region
          %s359 = sand.u32 %s26, 1
          %s360 = scalar_lea.sflag [#allocation8], %s359
          %s361 = sand.u32 %s76, 1
          %s362 = smul.addr %s361, 4
          %s363 = scalar_lea.vmem [#allocation7], %s362
          %s365 = ssub.s32 64, 64
          %366 = vsyncadd %s360, %s365
          %s367 = smul.addr %s33, 64
          %s368 = scalar_lea.hbm %s1, %s367
          %s370 = sshll.u32 %s363, 4
          %s371 = int_to_ptr.vmem [resolvable:$true] %s370
          %373 = dma.hbm_to_vmem [thread:$0]  %s368, 64, %s371, %s360
        $region48: #{tpu_custom_call.1} parent=39 // pred_fallthru
          _
      $region40: #{tpu_custom_call.1} parent=5 // pred_fallthru
        _
      %p374 = scmp.le.s32.totalorder 1, %s26
      %p375 = scmp.lt.s32.totalorder %s26, 3
      %p376 = pnand %p374, %p375
      %p377 = pneg %p376
      // Predicated region
      $region49: #{tpu_custom_call.1} parent=5 // pred_check
        _
      $region50: #{tpu_custom_call.1} parent=5 // pred_check_branch
        %379 = sbr.rel (%p376) target = $region52
      $region51: #{tpu_custom_call.1} parent=5 // pred_region
        %s380 = ssub.s32 %s26, 1
        %s381 = sand.u32 %s53, 1
        %s382 = scalar_lea.sflag [#allocation5], %s381
        %s383 = sand.u32 %s53, 1
        %s384 = smul.addr %s383, 4
        %s385 = scalar_lea.vmem [#allocation4], %s384
        // Predicated region
        $region53: #{tpu_custom_call.1} parent=51 // pred_check
          %p386 = pneg %p66
        $region54: #{tpu_custom_call.1} parent=51 // pred_check_branch
          %388 = sbr.rel (%p386) target = $region56
        $region55: #{tpu_custom_call.1} parent=51 // pred_region
          %389 = dma.done %s382, 64
        $region56: #{tpu_custom_call.1} parent=51 // pred_fallthru
          _
        %s390 = sand.u32 %s31, 1
        %s391 = scalar_lea.sflag [#allocation8], %s390
        %s392 = sand.u32 %s79, 1
        %s393 = smul.addr %s392, 4
        %s394 = scalar_lea.vmem [#allocation7], %s393
        // Predicated region
        $region57: #{tpu_custom_call.1} parent=51 // pred_check
          %p395 = pneg %p92
        $region58: #{tpu_custom_call.1} parent=51 // pred_check_branch
          %397 = sbr.rel (%p395) target = $region60
        $region59: #{tpu_custom_call.1} parent=51 // pred_region
          %398 = dma.done %s391, 64
        $region60: #{tpu_custom_call.1} parent=51 // pred_fallthru
          _
        // Predicated region
        $region61: #{tpu_custom_call.1} parent=51 // pred_check
          %p399 = pneg %p113
        $region62: #{tpu_custom_call.1} parent=51 // pred_check_branch
          %401 = sbr.rel (%p399) target = $region64
        $region63: #{tpu_custom_call.1} parent=51 // pred_region
          %402 = dma.done [#allocation8], 256
        $region64: #{tpu_custom_call.1} parent=51 // pred_fallthru
          _
        // Predicated region
        $region65: #{tpu_custom_call.1} parent=51 // pred_check
          %p403 = pneg %p134
        $region66: #{tpu_custom_call.1} parent=51 // pred_check_branch
          %405 = sbr.rel (%p403) target = $region68
        $region67: #{tpu_custom_call.1} parent=51 // pred_region
          %406 = dma.done [#allocation11], 16
        $region68: #{tpu_custom_call.1} parent=51 // pred_fallthru
          _
        // Predicated region
        $region69: #{tpu_custom_call.1} parent=51 // pred_check
          %p407 = pneg %p155
        $region70: #{tpu_custom_call.1} parent=51 // pred_check_branch
          %409 = sbr.rel (%p407) target = $region72
        $region71: #{tpu_custom_call.1} parent=51 // pred_region
          %410 = dma.done [#allocation11], 256
        $region72: #{tpu_custom_call.1} parent=51 // pred_fallthru
          _
        // Predicated region
        $region73: #{tpu_custom_call.1} parent=51 // pred_check
          %p411 = pneg %p176
        $region74: #{tpu_custom_call.1} parent=51 // pred_check_branch
          %413 = sbr.rel (%p411) target = $region76
        $region75: #{tpu_custom_call.1} parent=51 // pred_region
          %414 = dma.done [#allocation14], 16
        $region76: #{tpu_custom_call.1} parent=51 // pred_fallthru
          _
        // Predicated region
        $region77: #{tpu_custom_call.1} parent=51 // pred_check
          %p415 = pneg %p197
        $region78: #{tpu_custom_call.1} parent=51 // pred_check_branch
          %417 = sbr.rel (%p415) target = $region80
        $region79: #{tpu_custom_call.1} parent=51 // pred_region
          %418 = dma.done [#allocation14], 256
        $region80: #{tpu_custom_call.1} parent=51 // pred_fallthru
          _
        // Predicated region
        $region81: #{tpu_custom_call.1} parent=51 // pred_check
          %p419 = pneg %p218
        $region82: #{tpu_custom_call.1} parent=51 // pred_check_branch
          %421 = sbr.rel (%p419) target = $region84
        $region83: #{tpu_custom_call.1} parent=51 // pred_region
          %422 = dma.done [#allocation17], 16
        $region84: #{tpu_custom_call.1} parent=51 // pred_fallthru
          _
        %s423 = sand.u32 %s53, 1
        %s424 = scalar_lea.sflag [#allocation5], %s423
        %s425 = sand.u32 %s53, 1
        %s426 = smul.addr %s425, 4
        %s427 = scalar_lea.vmem [#allocation4], %s426
        %p428 = pneg %p66
        %p429 = pneg %p63
        %s430 = sand.u32 %s31, 1
        %s431 = scalar_lea.sflag [#allocation8], %s430
        %s432 = sand.u32 %s79, 1
        %s433 = smul.addr %s432, 4
        %s434 = scalar_lea.vmem [#allocation7], %s433
        %p435 = pneg %p92
        %p436 = pneg %p89
        %p437 = pneg %p113
        %p438 = pneg %p110
        %p439 = pneg %p134
        %p440 = pneg %p131
        %p441 = pneg %p155
        %p442 = pneg %p152
        %p443 = pneg %p176
        %p444 = pneg %p173
        %p445 = pneg %p197
        %p446 = pneg %p194
        %p447 = pneg %p218
        %p448 = pneg %p215
        %p449 = pneg %p246
        %p450 = pneg %p243
        %s451 = sand.u32 %s233, 1
        %s452 = scalar_lea.sflag [#allocation6], %s451
        %s453 = sand.u32 %s233, 1
        %s454 = smul.addr %s453, 8
        %s455 = scalar_lea.vmem [#allocation18], %s454
        %p457 = scmp.eq.s32.totalorder %s36, 0
        // Predicated region
        $region85: #{tpu_custom_call.1} parent=51 // pred_check
          %p458 = pneg %p457
        $region86: #{tpu_custom_call.1} parent=51 // pred_check_branch
          %460 = sbr.rel (%p458) target = $region88
        $region87: #{tpu_custom_call.1} parent=51 // pred_region
          %v461 = vld [vmem:[%s394] sm:$0x7]
          %v462 = vld [vmem:[#allocation12] sm:$0xf]
          %v463 = vld [vmem:[#allocation12 + $0x4] sm:$0xf]
          %v464 = vld [vmem:[#allocation12 + $0x8] sm:$0xf]
          %v465 = vld [vmem:[#allocation12 + $0xc] sm:$0xf]
          %v466 = vld [vmem:[#allocation13] sm:$0x1]
          %v468 = vlaneseq
          %v469 = vshrl.u32 %v468, 7
          %v470 = vsub.s32 0, %v469
          %v471 = vrot.slane %v466, %v470
          %v477 = vunpack.c.l.b16 %v462
          %v478 = vunpack.c.l.b16 %v463
          %v479 = vunpack.c.l.b16 %v464
          %v480 = vunpack.c.l.b16 %v465
          %v481 = vpack.c.b16 %v478, %v477
          %v482 = vpack.c.b16 %v480, %v479
          %vm485 = vcmask 261120
          %v487 = vsel %vm485, %v461, 0
          %489 = vmatprep.subr.bf16.mxu0 0
          %490 = vmatpush1.bf16.msra.mxu0 %v481
          %491 = vmatprep.subr.bf16.mxu0 0
          %492 = vmatpush1.bf16.msra.mxu0 %v482
          %493 = vmatprep.subr.bf16.mxu0 0
          %494 = vmatpush1.bf16.msra.mxu0 0
          %495 = vmatprep.subr.bf16.mxu0 0
          %496 = vmatpush1.bf16.msra.mxu0 0
          %497 = vmatprep.subr.bf16.mxu0 0
          %498 = vmatpush1.bf16.msra.mxu0 0
          %499 = vmatprep.subr.bf16.mxu0 0
          %500 = vmatpush1.bf16.msra.mxu0 0
          %501 = vmatprep.subr.bf16.mxu0 0
          %502 = vmatpush1.bf16.msra.mxu0 0
          %503 = vmatprep.subr.bf16.mxu0 0
          %504 = vmatpush1.bf16.msra.mxu0 0
          %505 = vmatprep.subr.bf16.mxu0 0
          %506 = vmatpush1.bf16.msra.mxu0 0
          %507 = vmatprep.subr.bf16.mxu0 0
          %508 = vmatpush1.bf16.msra.mxu0 0
          %509 = vmatprep.subr.bf16.mxu0 0
          %510 = vmatpush1.bf16.msra.mxu0 0
          %511 = vmatprep.subr.bf16.mxu0 0
          %512 = vmatpush1.bf16.msra.mxu0 0
          %513 = vmatprep.subr.bf16.mxu0 0
          %514 = vmatpush1.bf16.msra.mxu0 0
          %515 = vmatprep.subr.bf16.mxu0 0
          %516 = vmatpush1.bf16.msra.mxu0 0
          %517 = vmatprep.subr.bf16.mxu0 0
          %518 = vmatpush1.bf16.msra.mxu0 0
          %519 = vmatprep.subr.bf16.mxu0 0
          %520 = vmatpush1.bf16.msra.mxu0 0
          %521 = vmatprep.mubr.bf16.mxu0 0
          %522 = vmatmul.mubr.bf16.gmra.mrb[0].mxu0 %v487
          %v523 = vpop.f32.mrb[0].mxu0
          %v524 = vadd.f32 %v471, %v523
          %v525 = vpop.f32.mrb[0].mxu0
          %v526 = vpop.f32.mrb[0].mxu0
          %v527 = vpop.f32.mrb[0].mxu0
          %528 = vdwg.mxu0
          %v529 = vpack.c.bf16 %v524, %v524
          %vm530 = vcmask 26624
          %531 = vst.msk [vmem:[#allocation2] sm:$0x7] %vm530, %v529
          %v533 = vunpack.c.l.b16 %v529
          %v534 = vpack.c.b16 %v533, %v533
          %535 = vrot.lane.b32.xlu0 %v534, 96
          %v536 = vpop.permute.xlu0 %535
          %s538 = scalar_lea.vmem [#allocation2], 32
          %539 = vst.msk [vmem:[%s538] sm:$0x7] %vm530, %v536
          %540 = vrot.lane.b32.xlu0 %v534, 124
          %v541 = vpop.permute.xlu0 %540
          %s543 = scalar_lea.vmem [#allocation2], 4
          %544 = vst.msk [vmem:[%s543] sm:$0x7] %vm530, %v541
          %545 = vrot.lane.b32.xlu0 %v534, 92
          %v546 = vpop.permute.xlu0 %545
          %s548 = scalar_lea.vmem [#allocation2], 36
          %549 = vst.msk [vmem:[%s548] sm:$0x7] %vm530, %v546
          %550 = vrot.lane.b32.xlu0 %v534, 120
          %v551 = vpop.permute.xlu0 %550
          %s553 = scalar_lea.vmem [#allocation2], 8
          %554 = vst.msk [vmem:[%s553] sm:$0x7] %vm530, %v551
          %555 = vrot.lane.b32.xlu0 %v534, 88
          %v556 = vpop.permute.xlu0 %555
          %s558 = scalar_lea.vmem [#allocation2], 40
          %559 = vst.msk [vmem:[%s558] sm:$0x7] %vm530, %v556
          %560 = vrot.lane.b32.xlu0 %v534, 116
          %v561 = vpop.permute.xlu0 %560
          %s563 = scalar_lea.vmem [#allocation2], 12
          %564 = vst.msk [vmem:[%s563] sm:$0x7] %vm530, %v561
          %565 = vrot.lane.b32.xlu0 %v534, 84
          %v566 = vpop.permute.xlu0 %565
          %s568 = scalar_lea.vmem [#allocation2], 44
          %569 = vst.msk [vmem:[%s568] sm:$0x7] %vm530, %v566
          %570 = vrot.lane.b32.xlu0 %v534, 112
          %v571 = vpop.permute.xlu0 %570
          %s573 = scalar_lea.vmem [#allocation2], 16
          %574 = vst.msk [vmem:[%s573] sm:$0x7] %vm530, %v571
          %575 = vrot.lane.b32.xlu0 %v534, 80
          %v576 = vpop.permute.xlu0 %575
          %s578 = scalar_lea.vmem [#allocation2], 48
          %579 = vst.msk [vmem:[%s578] sm:$0x7] %vm530, %v576
          %580 = vrot.lane.b32.xlu0 %v534, 108
          %v581 = vpop.permute.xlu0 %580
          %s583 = scalar_lea.vmem [#allocation2], 20
          %584 = vst.msk [vmem:[%s583] sm:$0x7] %vm530, %v581
          %585 = vrot.lane.b32.xlu0 %v534, 76
          %v586 = vpop.permute.xlu0 %585
          %s588 = scalar_lea.vmem [#allocation2], 52
          %589 = vst.msk [vmem:[%s588] sm:$0x7] %vm530, %v586
          %590 = vrot.lane.b32.xlu0 %v534, 104
          %v591 = vpop.permute.xlu0 %590
          %s593 = scalar_lea.vmem [#allocation2], 24
          %594 = vst.msk [vmem:[%s593] sm:$0x7] %vm530, %v591
          %595 = vrot.lane.b32.xlu0 %v534, 72
          %v596 = vpop.permute.xlu0 %595
          %s598 = scalar_lea.vmem [#allocation2], 56
          %599 = vst.msk [vmem:[%s598] sm:$0x7] %vm530, %v596
          %600 = vrot.lane.b32.xlu0 %v534, 100
          %v601 = vpop.permute.xlu0 %600
          %s603 = scalar_lea.vmem [#allocation2], 28
          %604 = vst.msk [vmem:[%s603] sm:$0x7] %vm530, %v601
          %605 = vrot.lane.b32.xlu0 %v534, 68
          %v606 = vpop.permute.xlu0 %605
          %s608 = scalar_lea.vmem [#allocation2], 60
          %609 = vst.msk [vmem:[%s608] sm:$0x7] %vm530, %v606
        $region88: #{tpu_custom_call.1} parent=51 // pred_fallthru
          _
        %v610 = vld [vmem:[%s385] sm:$0xf]
        %v611 = vld [vmem:[#allocation9] sm:$0xf]
        %v612 = vld [vmem:[#allocation9 + $0x4] sm:$0xf]
        %v613 = vld [vmem:[#allocation9 + $0x8] sm:$0xf]
        %v614 = vld [vmem:[#allocation9 + $0xc] sm:$0xf]
        %v615 = vld [vmem:[#allocation10] sm:$0x1]
        %v617 = vlaneseq
        %v618 = vshrl.u32 %v617, 7
        %v619 = vsub.s32 0, %v618
        %v620 = vrot.slane %v615, %v619
        %v626 = vunpack.c.l.b16 %v611
        %v627 = vunpack.c.l.b16 %v612
        %v628 = vunpack.c.l.b16 %v613
        %v629 = vunpack.c.l.b16 %v614
        %v630 = vpack.c.b16 %v627, %v626
        %v631 = vpack.c.b16 %v629, %v628
        %vm634 = vcmask 261120
        %v636 = vsel %vm634, %v610, 0
        %638 = vmatprep.subr.bf16.mxu0 0
        %639 = vmatpush1.bf16.msra.mxu0 %v630
        %640 = vmatprep.subr.bf16.mxu0 0
        %641 = vmatpush1.bf16.msra.mxu0 %v631
        %642 = vmatprep.subr.bf16.mxu0 0
        %643 = vmatpush1.bf16.msra.mxu0 0
        %644 = vmatprep.subr.bf16.mxu0 0
        %645 = vmatpush1.bf16.msra.mxu0 0
        %646 = vmatprep.subr.bf16.mxu0 0
        %647 = vmatpush1.bf16.msra.mxu0 0
        %648 = vmatprep.subr.bf16.mxu0 0
        %649 = vmatpush1.bf16.msra.mxu0 0
        %650 = vmatprep.subr.bf16.mxu0 0
        %651 = vmatpush1.bf16.msra.mxu0 0
        %652 = vmatprep.subr.bf16.mxu0 0
        %653 = vmatpush1.bf16.msra.mxu0 0
        %654 = vmatprep.subr.bf16.mxu0 0
        %655 = vmatpush1.bf16.msra.mxu0 0
        %656 = vmatprep.subr.bf16.mxu0 0
        %657 = vmatpush1.bf16.msra.mxu0 0
        %658 = vmatprep.subr.bf16.mxu0 0
        %659 = vmatpush1.bf16.msra.mxu0 0
        %660 = vmatprep.subr.bf16.mxu0 0
        %661 = vmatpush1.bf16.msra.mxu0 0
        %662 = vmatprep.subr.bf16.mxu0 0
        %663 = vmatpush1.bf16.msra.mxu0 0
        %664 = vmatprep.subr.bf16.mxu0 0
        %665 = vmatpush1.bf16.msra.mxu0 0
        %666 = vmatprep.subr.bf16.mxu0 0
        %667 = vmatpush1.bf16.msra.mxu0 0
        %668 = vmatprep.subr.bf16.mxu0 0
        %669 = vmatpush1.bf16.msra.mxu0 0
        %670 = vmatprep.mubr.bf16.mxu0 0
        %671 = vmatmul.mubr.bf16.gmra.mrb[0].mxu0 %v636
        %v672 = vpop.f32.mrb[0].mxu0
        %v673 = vadd.f32 %v620, %v672
        %v674 = vpop.f32.mrb[0].mxu0
        %v675 = vpop.f32.mrb[0].mxu0
        %v676 = vpop.f32.mrb[0].mxu0
        %677 = vdwg.mxu0
        %v678 = vmul.f32 %v673, 0.5
        %v679 = vpack.c.bf16 %v678, %v678
        %v680 = vld [vmem:[#allocation2] sm:$0x7]
        %s681 = scalar_lea.vmem [#allocation2], 32
        %v682 = vld [vmem:[%s681] sm:$0x7]
        %vm683 = vcmask 31744
        %v685 = vsel %vm683, %v679, 0
        %v688 = vsel %vm683, %v680, 0
        %690 = vmatprep.subr.bf16.mxu0 0
        %691 = vmatpush1.bf16.xpose.msra.mxu0 %v688
        %692 = vmatprep.subr.bf16.mxu0 0
        %693 = vmatpush1.bf16.xpose.msra.mxu0 0
        %694 = vmatprep.subr.bf16.mxu0 0
        %695 = vmatpush1.bf16.xpose.msra.mxu0 0
        %696 = vmatprep.subr.bf16.mxu0 0
        %697 = vmatpush1.bf16.xpose.msra.mxu0 0
        %698 = vmatprep.subr.bf16.mxu0 0
        %699 = vmatpush1.bf16.xpose.msra.mxu0 0
        %700 = vmatprep.subr.bf16.mxu0 0
        %701 = vmatpush1.bf16.xpose.msra.mxu0 0
        %702 = vmatprep.subr.bf16.mxu0 0
        %703 = vmatpush1.bf16.xpose.msra.mxu0 0
        %704 = vmatprep.subr.bf16.mxu0 0
        %705 = vmatpush1.bf16.xpose.msra.mxu0 0
        %706 = vmatprep.subr.bf16.mxu0 0
        %707 = vmatpush1.bf16.xpose.msra.mxu0 0
        %708 = vmatprep.subr.bf16.mxu0 0
        %709 = vmatpush1.bf16.xpose.msra.mxu0 0
        %710 = vmatprep.subr.bf16.mxu0 0
        %711 = vmatpush1.bf16.xpose.msra.mxu0 0
        %712 = vmatprep.subr.bf16.mxu0 0
        %713 = vmatpush1.bf16.xpose.msra.mxu0 0
        %714 = vmatprep.subr.bf16.mxu0 0
        %715 = vmatpush1.bf16.xpose.msra.mxu0 0
        %716 = vmatprep.subr.bf16.mxu0 0
        %717 = vmatpush1.bf16.xpose.msra.mxu0 0
        %718 = vmatprep.subr.bf16.mxu0 0
        %719 = vmatpush1.bf16.xpose.msra.mxu0 0
        %720 = vmatprep.subr.bf16.mxu0 0
        %721 = vmatpush1.bf16.xpose.msra.mxu0 0
        %722 = vmatprep.mubr.bf16.mxu0 0
        %723 = vmatmul.mubr.bf16.gmra.mrb[0].mxu0 %v685
        %v724 = vpop.f32.mrb[0].mxu0
        %v725 = vadd.f32 0.0, %v724
        %v726 = vpop.f32.mrb[0].mxu0
        %v727 = vpop.f32.mrb[0].mxu0
        %v728 = vpop.f32.mrb[0].mxu0
        %729 = vdwg.mxu0
        %vm730 = vcmask 48128
        %v731 = vsel %vm730, %v725, -inf
        %732 = vmax.xlane.f32.xlu0 %v731
        %v733 = vpop.xlane.xlu0 %732
        %v734 = vsub.f32 %v725, %v733
        %v735 = vmul.f32 %v734, 1.442695
        %v736 = vpow.pop %v735
        %v737 = vsel %vm730, %v736, 0.0
        %738 = vadd.xlane.f32.xlu0 %v737
        %v739 = vpop.xlane.xlu0 %738
        %v740 = vrcp.pop %v739
        %v741 = vmul.f32 %v736, %v740
        %v742 = vpack.c.bf16 %v741, %v741
        %v744 = vsel %vm730, %v742, 0
        %vm746 = vcmask 1042432
        %v748 = vsel %vm746, %v682, 0
        %750 = vmatprep.subr.bf16.mxu0 0
        %751 = vmatpush1.bf16.msra.mxu0 %v748
        %752 = vmatprep.subr.bf16.mxu0 0
        %753 = vmatpush1.bf16.msra.mxu0 0
        %754 = vmatprep.subr.bf16.mxu0 0
        %755 = vmatpush1.bf16.msra.mxu0 0
        %756 = vmatprep.subr.bf16.mxu0 0
        %757 = vmatpush1.bf16.msra.mxu0 0
        %758 = vmatprep.subr.bf16.mxu0 0
        %759 = vmatpush1.bf16.msra.mxu0 0
        %760 = vmatprep.subr.bf16.mxu0 0
        %761 = vmatpush1.bf16.msra.mxu0 0
        %762 = vmatprep.subr.bf16.mxu0 0
        %763 = vmatpush1.bf16.msra.mxu0 0
        %764 = vmatprep.subr.bf16.mxu0 0
        %765 = vmatpush1.bf16.msra.mxu0 0
        %766 = vmatprep.subr.bf16.mxu0 0
        %767 = vmatpush1.bf16.msra.mxu0 0
        %768 = vmatprep.subr.bf16.mxu0 0
        %769 = vmatpush1.bf16.msra.mxu0 0
        %770 = vmatprep.subr.bf16.mxu0 0
        %771 = vmatpush1.bf16.msra.mxu0 0
        %772 = vmatprep.subr.bf16.mxu0 0
        %773 = vmatpush1.bf16.msra.mxu0 0
        %774 = vmatprep.subr.bf16.mxu0 0
        %775 = vmatpush1.bf16.msra.mxu0 0
        %776 = vmatprep.subr.bf16.mxu0 0
        %777 = vmatpush1.bf16.msra.mxu0 0
        %778 = vmatprep.subr.bf16.mxu0 0
        %779 = vmatpush1.bf16.msra.mxu0 0
        %780 = vmatprep.subr.bf16.mxu0 0
        %781 = vmatpush1.bf16.msra.mxu0 0
        %782 = vmatprep.mubr.bf16.mxu0 0
        %783 = vmatmul.mubr.bf16.gmra.mrb[0].mxu0 %v744
        %v784 = vpop.f32.mrb[0].mxu0
        %v785 = vadd.f32 0.0, %v784
        %v786 = vpop.f32.mrb[0].mxu0
        %v787 = vpop.f32.mrb[0].mxu0
        %v788 = vpop.f32.mrb[0].mxu0
        %789 = vdwg.mxu0
        %v790 = vpack.c.bf16 %v785, %v785
        %vm791 = vcmask 27648
        %792 = vst.msk [vmem:[#allocation3] sm:$0xf] %vm791, %v790
        %s793 = scalar_lea.vmem [#allocation2], 4
        %v794 = vld [vmem:[%s793] sm:$0x7]
        %s795 = scalar_lea.vmem [#allocation2], 36
        %v796 = vld [vmem:[%s795] sm:$0x7]
        %798 = vrot.lane.b32.xlu0 %v679, 124
        %v799 = vpop.permute.xlu0 %798
        %v801 = vsel %vm683, %v799, 0
        %v804 = vsel %vm683, %v794, 0
        %806 = vmatprep.subr.bf16.mxu0 0
        %807 = vmatpush1.bf16.xpose.msra.mxu0 %v804
        %808 = vmatprep.subr.bf16.mxu0 0
        %809 = vmatpush1.bf16.xpose.msra.mxu0 0
        %810 = vmatprep.subr.bf16.mxu0 0
        %811 = vmatpush1.bf16.xpose.msra.mxu0 0
        %812 = vmatprep.subr.bf16.mxu0 0
        %813 = vmatpush1.bf16.xpose.msra.mxu0 0
        %814 = vmatprep.subr.bf16.mxu0 0
        %815 = vmatpush1.bf16.xpose.msra.mxu0 0
        %816 = vmatprep.subr.bf16.mxu0 0
        %817 = vmatpush1.bf16.xpose.msra.mxu0 0
        %818 = vmatprep.subr.bf16.mxu0 0
        %819 = vmatpush1.bf16.xpose.msra.mxu0 0
        %820 = vmatprep.subr.bf16.mxu0 0
        %821 = vmatpush1.bf16.xpose.msra.mxu0 0
        %822 = vmatprep.subr.bf16.mxu0 0
        %823 = vmatpush1.bf16.xpose.msra.mxu0 0
        %824 = vmatprep.subr.bf16.mxu0 0
        %825 = vmatpush1.bf16.xpose.msra.mxu0 0
        %826 = vmatprep.subr.bf16.mxu0 0
        %827 = vmatpush1.bf16.xpose.msra.mxu0 0
        %828 = vmatprep.subr.bf16.mxu0 0
        %829 = vmatpush1.bf16.xpose.msra.mxu0 0
        %830 = vmatprep.subr.bf16.mxu0 0
        %831 = vmatpush1.bf16.xpose.msra.mxu0 0
        %832 = vmatprep.subr.bf16.mxu0 0
        %833 = vmatpush1.bf16.xpose.msra.mxu0 0
        %834 = vmatprep.subr.bf16.mxu0 0
        %835 = vmatpush1.bf16.xpose.msra.mxu0 0
        %836 = vmatprep.subr.bf16.mxu0 0
        %837 = vmatpush1.bf16.xpose.msra.mxu0 0
        %838 = vmatprep.mubr.bf16.mxu0 0
        %839 = vmatmul.mubr.bf16.gmra.mrb[0].mxu0 %v801
        %v840 = vpop.f32.mrb[0].mxu0
        %v841 = vadd.f32 0.0, %v840
        %v842 = vpop.f32.mrb[0].mxu0
        %v843 = vpop.f32.mrb[0].mxu0
        %v844 = vpop.f32.mrb[0].mxu0
        %845 = vdwg.mxu0
        %v846 = vsel %vm730, %v841, -inf
        %847 = vmax.xlane.f32.xlu0 %v846
        %v848 = vpop.xlane.xlu0 %847
        %v849 = vsub.f32 %v841, %v848
        %v850 = vmul.f32 %v849, 1.442695
        %v851 = vpow.pop %v850
        %v852 = vsel %vm730, %v851, 0.0
        %853 = vadd.xlane.f32.xlu0 %v852
        %v854 = vpop.xlane.xlu0 %853
        %v855 = vrcp.pop %v854
        %v856 = vmul.f32 %v851, %v855
        %v857 = vpack.c.bf16 %v856, %v856
        %v859 = vsel %vm730, %v857, 0
        %v862 = vsel %vm746, %v796, 0
        %864 = vmatprep.subr.bf16.mxu0 0
        %865 = vmatpush1.bf16.msra.mxu0 %v862
        %866 = vmatprep.subr.bf16.mxu0 0
        %867 = vmatpush1.bf16.msra.mxu0 0
        %868 = vmatprep.subr.bf16.mxu0 0
        %869 = vmatpush1.bf16.msra.mxu0 0
        %870 = vmatprep.subr.bf16.mxu0 0
        %871 = vmatpush1.bf16.msra.mxu0 0
        %872 = vmatprep.subr.bf16.mxu0 0
        %873 = vmatpush1.bf16.msra.mxu0 0
        %874 = vmatprep.subr.bf16.mxu0 0
        %875 = vmatpush1.bf16.msra.mxu0 0
        %876 = vmatprep.subr.bf16.mxu0 0
        %877 = vmatpush1.bf16.msra.mxu0 0
        %878 = vmatprep.subr.bf16.mxu0 0
        %879 = vmatpush1.bf16.msra.mxu0 0
        %880 = vmatprep.subr.bf16.mxu0 0
        %881 = vmatpush1.bf16.msra.mxu0 0
        %882 = vmatprep.subr.bf16.mxu0 0
        %883 = vmatpush1.bf16.msra.mxu0 0
        %884 = vmatprep.subr.bf16.mxu0 0
        %885 = vmatpush1.bf16.msra.mxu0 0
        %886 = vmatprep.subr.bf16.mxu0 0
        %887 = vmatpush1.bf16.msra.mxu0 0
        %888 = vmatprep.subr.bf16.mxu0 0
        %889 = vmatpush1.bf16.msra.mxu0 0
        %890 = vmatprep.subr.bf16.mxu0 0
        %891 = vmatpush1.bf16.msra.mxu0 0
        %892 = vmatprep.subr.bf16.mxu0 0
        %893 = vmatpush1.bf16.msra.mxu0 0
        %894 = vmatprep.subr.bf16.mxu0 0
        %895 = vmatpush1.bf16.msra.mxu0 0
        %896 = vmatprep.mubr.bf16.mxu0 0
        %897 = vmatmul.mubr.bf16.gmra.mrb[0].mxu0 %v859
        %v898 = vpop.f32.mrb[0].mxu0
        %v899 = vadd.f32 0.0, %v898
        %v900 = vpop.f32.mrb[0].mxu0
        %v901 = vpop.f32.mrb[0].mxu0
        %v902 = vpop.f32.mrb[0].mxu0
        %903 = vdwg.mxu0
        %v904 = vpack.c.bf16 %v899, %v899
        %v906 = vunpack.c.l.b16 %v904
        %v907 = vpack.c.b16 %v906, %v906
        %908 = vrot.lane.b32.xlu0 %v907, 4
        %v909 = vpop.permute.xlu0 %908
        %vm911 = vcmask 60448
        %912 = vst.msk [vmem:[#allocation3] sm:$0xf] %vm911, %v909
        %s913 = scalar_lea.vmem [#allocation2], 8
        %v914 = vld [vmem:[%s913] sm:$0x7]
        %s915 = scalar_lea.vmem [#allocation2], 40
        %v916 = vld [vmem:[%s915] sm:$0x7]
        %917 = vrot.lane.b32.xlu0 %v679, 120
        %v918 = vpop.permute.xlu0 %917
        %v920 = vsel %vm683, %v918, 0
        %v923 = vsel %vm683, %v914, 0
        %925 = vmatprep.subr.bf16.mxu0 0
        %926 = vmatpush1.bf16.xpose.msra.mxu0 %v923
        %927 = vmatprep.subr.bf16.mxu0 0
        %928 = vmatpush1.bf16.xpose.msra.mxu0 0
        %929 = vmatprep.subr.bf16.mxu0 0
        %930 = vmatpush1.bf16.xpose.msra.mxu0 0
        %931 = vmatprep.subr.bf16.mxu0 0
        %932 = vmatpush1.bf16.xpose.msra.mxu0 0
        %933 = vmatprep.subr.bf16.mxu0 0
        %934 = vmatpush1.bf16.xpose.msra.mxu0 0
        %935 = vmatprep.subr.bf16.mxu0 0
        %936 = vmatpush1.bf16.xpose.msra.mxu0 0
        %937 = vmatprep.subr.bf16.mxu0 0
        %938 = vmatpush1.bf16.xpose.msra.mxu0 0
        %939 = vmatprep.subr.bf16.mxu0 0
        %940 = vmatpush1.bf16.xpose.msra.mxu0 0
        %941 = vmatprep.subr.bf16.mxu0 0
        %942 = vmatpush1.bf16.xpose.msra.mxu0 0
        %943 = vmatprep.subr.bf16.mxu0 0
        %944 = vmatpush1.bf16.xpose.msra.mxu0 0
        %945 = vmatprep.subr.bf16.mxu0 0
        %946 = vmatpush1.bf16.xpose.msra.mxu0 0
        %947 = vmatprep.subr.bf16.mxu0 0
        %948 = vmatpush1.bf16.xpose.msra.mxu0 0
        %949 = vmatprep.subr.bf16.mxu0 0
        %950 = vmatpush1.bf16.xpose.msra.mxu0 0
        %951 = vmatprep.subr.bf16.mxu0 0
        %952 = vmatpush1.bf16.xpose.msra.mxu0 0
        %953 = vmatprep.subr.bf16.mxu0 0
        %954 = vmatpush1.bf16.xpose.msra.mxu0 0
        %955 = vmatprep.subr.bf16.mxu0 0
        %956 = vmatpush1.bf16.xpose.msra.mxu0 0
        %957 = vmatprep.mubr.bf16.mxu0 0
        %958 = vmatmul.mubr.bf16.gmra.mrb[0].mxu0 %v920
        %v959 = vpop.f32.mrb[0].mxu0
        %v960 = vadd.f32 0.0, %v959
        %v961 = vpop.f32.mrb[0].mxu0
        %v962 = vpop.f32.mrb[0].mxu0
        %v963 = vpop.f32.mrb[0].mxu0
        %964 = vdwg.mxu0
        %v965 = vsel %vm730, %v960, -inf
        %966 = vmax.xlane.f32.xlu0 %v965
        %v967 = vpop.xlane.xlu0 %966
        %v968 = vsub.f32 %v960, %v967
        %v969 = vmul.f32 %v968, 1.442695
        %v970 = vpow.pop %v969
        %v971 = vsel %vm730, %v970, 0.0
        %972 = vadd.xlane.f32.xlu0 %v971
        %v973 = vpop.xlane.xlu0 %972
        %v974 = vrcp.pop %v973
        %v975 = vmul.f32 %v970, %v974
        %v976 = vpack.c.bf16 %v975, %v975
        %v978 = vsel %vm730, %v976, 0
        %v981 = vsel %vm746, %v916, 0
        %983 = vmatprep.subr.bf16.mxu0 0
        %984 = vmatpush1.bf16.msra.mxu0 %v981
        %985 = vmatprep.subr.bf16.mxu0 0
        %986 = vmatpush1.bf16.msra.mxu0 0
        %987 = vmatprep.subr.bf16.mxu0 0
        %988 = vmatpush1.bf16.msra.mxu0 0
        %989 = vmatprep.subr.bf16.mxu0 0
        %990 = vmatpush1.bf16.msra.mxu0 0
        %991 = vmatprep.subr.bf16.mxu0 0
        %992 = vmatpush1.bf16.msra.mxu0 0
        %993 = vmatprep.subr.bf16.mxu0 0
        %994 = vmatpush1.bf16.msra.mxu0 0
        %995 = vmatprep.subr.bf16.mxu0 0
        %996 = vmatpush1.bf16.msra.mxu0 0
        %997 = vmatprep.subr.bf16.mxu0 0
        %998 = vmatpush1.bf16.msra.mxu0 0
        %999 = vmatprep.subr.bf16.mxu0 0
        %1000 = vmatpush1.bf16.msra.mxu0 0
        %1001 = vmatprep.subr.bf16.mxu0 0
        %1002 = vmatpush1.bf16.msra.mxu0 0
        %1003 = vmatprep.subr.bf16.mxu0 0
        %1004 = vmatpush1.bf16.msra.mxu0 0
        %1005 = vmatprep.subr.bf16.mxu0 0
        %1006 = vmatpush1.bf16.msra.mxu0 0
        %1007 = vmatprep.subr.bf16.mxu0 0
        %1008 = vmatpush1.bf16.msra.mxu0 0
        %1009 = vmatprep.subr.bf16.mxu0 0
        %1010 = vmatpush1.bf16.msra.mxu0 0
        %1011 = vmatprep.subr.bf16.mxu0 0
        %1012 = vmatpush1.bf16.msra.mxu0 0
        %1013 = vmatprep.subr.bf16.mxu0 0
        %1014 = vmatpush1.bf16.msra.mxu0 0
        %1015 = vmatprep.mubr.bf16.mxu0 0
        %1016 = vmatmul.mubr.bf16.gmra.mrb[0].mxu0 %v978
        %v1017 = vpop.f32.mrb[0].mxu0
        %v1018 = vadd.f32 0.0, %v1017
        %v1019 = vpop.f32.mrb[0].mxu0
        %v1020 = vpop.f32.mrb[0].mxu0
        %v1021 = vpop.f32.mrb[0].mxu0
        %1022 = vdwg.mxu0
        %v1023 = vpack.c.bf16 %v1018, %v1018
        %v1025 = vunpack.c.l.b16 %v1023
        %v1026 = vpack.c.b16 %v1025, %v1025
        %1027 = vrot.lane.b32.xlu0 %v1026, 8
        %v1028 = vpop.permute.xlu0 %1027
        %vm1030 = vcmask 93248
        %1031 = vst.msk [vmem:[#allocation3] sm:$0xf] %vm1030, %v1028
        %s1032 = scalar_lea.vmem [#allocation2], 12
        %v1033 = vld [vmem:[%s1032] sm:$0x7]
        %s1034 = scalar_lea.vmem [#allocation2], 44
        %v1035 = vld [vmem:[%s1034] sm:$0x7]
        %1036 = vrot.lane.b32.xlu0 %v679, 116
        %v1037 = vpop.permute.xlu0 %1036
        %v1039 = vsel %vm683, %v1037, 0
        %v1042 = vsel %vm683, %v1033, 0
        %1044 = vmatprep.subr.bf16.mxu0 0
        %1045 = vmatpush1.bf16.xpose.msra.mxu0 %v1042
        %1046 = vmatprep.subr.bf16.mxu0 0
        %1047 = vmatpush1.bf16.xpose.msra.mxu0 0
        %1048 = vmatprep.subr.bf16.mxu0 0
        %1049 = vmatpush1.bf16.xpose.msra.mxu0 0
        %1050 = vmatprep.subr.bf16.mxu0 0
        %1051 = vmatpush1.bf16.xpose.msra.mxu0 0
        %1052 = vmatprep.subr.bf16.mxu0 0
        %1053 = vmatpush1.bf16.xpose.msra.mxu0 0
        %1054 = vmatprep.subr.bf16.mxu0 0
        %1055 = vmatpush1.bf16.xpose.msra.mxu0 0
        %1056 = vmatprep.subr.bf16.mxu0 0
        %1057 = vmatpush1.bf16.xpose.msra.mxu0 0
        %1058 = vmatprep.subr.bf16.mxu0 0
        %1059 = vmatpush1.bf16.xpose.msra.mxu0 0
        %1060 = vmatprep.subr.bf16.mxu0 0
        %1061 = vmatpush1.bf16.xpose.msra.mxu0 0
        %1062 = vmatprep.subr.bf16.mxu0 0
        %1063 = vmatpush1.bf16.xpose.msra.mxu0 0
        %1064 = vmatprep.subr.bf16.mxu0 0
        %1065 = vmatpush1.bf16.xpose.msra.mxu0 0
        %1066 = vmatprep.subr.bf16.mxu0 0
        %1067 = vmatpush1.bf16.xpose.msra.mxu0 0
        %1068 = vmatprep.subr.bf16.mxu0 0
        %1069 = vmatpush1.bf16.xpose.msra.mxu0 0
        %1070 = vmatprep.subr.bf16.mxu0 0
        %1071 = vmatpush1.bf16.xpose.msra.mxu0 0
        %1072 = vmatprep.subr.bf16.mxu0 0
        %1073 = vmatpush1.bf16.xpose.msra.mxu0 0
        %1074 = vmatprep.subr.bf16.mxu0 0
        %1075 = vmatpush1.bf16.xpose.msra.mxu0 0
        %1076 = vmatprep.mubr.bf16.mxu0 0
        %1077 = vmatmul.mubr.bf16.gmra.mrb[0].mxu0 %v1039
        %v1078 = vpop.f32.mrb[0].mxu0
        %v1079 = vadd.f32 0.0, %v1078
        %v1080 = vpop.f32.mrb[0].mxu0
        %v1081 = vpop.f32.mrb[0].mxu0
        %v1082 = vpop.f32.mrb[0].mxu0
        %1083 = vdwg.mxu0
        %v1084 = vsel %vm730, %v1079, -inf
        %1085 = vmax.xlane.f32.xlu0 %v1084
        %v1086 = vpop.xlane.xlu0 %1085
        %v1087 = vsub.f32 %v1079, %v1086
        %v1088 = vmul.f32 %v1087, 1.442695
        %v1089 = vpow.pop %v1088
        %v1090 = vsel %vm730, %v1089, 0.0
        %1091 = vadd.xlane.f32.xlu0 %v1090
        %v1092 = vpop.xlane.xlu0 %1091
        %v1093 = vrcp.pop %v1092
        %v1094 = vmul.f32 %v1089, %v1093
        %v1095 = vpack.c.bf16 %v1094, %v1094
        %v1097 = vsel %vm730, %v1095, 0
        %v1100 = vsel %vm746, %v1035, 0
        %1102 = vmatprep.subr.bf16.mxu0 0
        %1103 = vmatpush1.bf16.msra.mxu0 %v1100
        %1104 = vmatprep.subr.bf16.mxu0 0
        %1105 = vmatpush1.bf16.msra.mxu0 0
        %1106 = vmatprep.subr.bf16.mxu0 0
        %1107 = vmatpush1.bf16.msra.mxu0 0
        %1108 = vmatprep.subr.bf16.mxu0 0
        %1109 = vmatpush1.bf16.msra.mxu0 0
        %1110 = vmatprep.subr.bf16.mxu0 0
        %1111 = vmatpush1.bf16.msra.mxu0 0
        %1112 = vmatprep.subr.bf16.mxu0 0
        %1113 = vmatpush1.bf16.msra.mxu0 0
        %1114 = vmatprep.subr.bf16.mxu0 0
        %1115 = vmatpush1.bf16.msra.mxu0 0
        %1116 = vmatprep.subr.bf16.mxu0 0
        %1117 = vmatpush1.bf16.msra.mxu0 0
        %1118 = vmatprep.subr.bf16.mxu0 0
        %1119 = vmatpush1.bf16.msra.mxu0 0
        %1120 = vmatprep.subr.bf16.mxu0 0
        %1121 = vmatpush1.bf16.msra.mxu0 0
        %1122 = vmatprep.subr.bf16.mxu0 0
        %1123 = vmatpush1.bf16.msra.mxu0 0
        %1124 = vmatprep.subr.bf16.mxu0 0
        %1125 = vmatpush1.bf16.msra.mxu0 0
        %1126 = vmatprep.subr.bf16.mxu0 0
        %1127 = vmatpush1.bf16.msra.mxu0 0
        %1128 = vmatprep.subr.bf16.mxu0 0
        %1129 = vmatpush1.bf16.msra.mxu0 0
        %1130 = vmatprep.subr.bf16.mxu0 0
        %1131 = vmatpush1.bf16.msra.mxu0 0
        %1132 = vmatprep.subr.bf16.mxu0 0
        %1133 = vmatpush1.bf16.msra.mxu0 0
        %1134 = vmatprep.mubr.bf16.mxu0 0
        %1135 = vmatmul.mubr.bf16.gmra.mrb[0].mxu0 %v1097
        %v1136 = vpop.f32.mrb[0].mxu0
        %v1137 = vadd.f32 0.0, %v1136
        %v1138 = vpop.f32.mrb[0].mxu0
        %v1139 = vpop.f32.mrb[0].mxu0
        %v1140 = vpop.f32.mrb[0].mxu0
        %1141 = vdwg.mxu0
        %v1142 = vpack.c.bf16 %v1137, %v1137
        %v1144 = vunpack.c.l.b16 %v1142
        %v1145 = vpack.c.b16 %v1144, %v1144
        %1146 = vrot.lane.b32.xlu0 %v1145, 12
        %v1147 = vpop.permute.xlu0 %1146
        %vm1149 = vcmask 126048
        %1150 = vst.msk [vmem:[#allocation3] sm:$0xf] %vm1149, %v1147
        %s1151 = scalar_lea.vmem [#allocation2], 16
        %v1152 = vld [vmem:[%s1151] sm:$0x7]
        %s1153 = scalar_lea.vmem [#allocation2], 48
        %v1154 = vld [vmem:[%s1153] sm:$0x7]
        %1155 = vrot.lane.b32.xlu0 %v679, 112
        %v1156 = vpop.permute.xlu0 %1155
        %v1158 = vsel %vm683, %v1156, 0
        %v1161 = vsel %vm683, %v1152, 0
        %1163 = vmatprep.subr.bf16.mxu0 0
        %1164 = vmatpush1.bf16.xpose.msra.mxu0 %v1161
        %1165 = vmatprep.subr.bf16.mxu0 0
        %1166 = vmatpush1.bf16.xpose.msra.mxu0 0
        %1167 = vmatprep.subr.bf16.mxu0 0
        %1168 = vmatpush1.bf16.xpose.msra.mxu0 0
        %1169 = vmatprep.subr.bf16.mxu0 0
        %1170 = vmatpush1.bf16.xpose.msra.mxu0 0
        %1171 = vmatprep.subr.bf16.mxu0 0
        %1172 = vmatpush1.bf16.xpose.msra.mxu0 0
        %1173 = vmatprep.subr.bf16.mxu0 0
        %1174 = vmatpush1.bf16.xpose.msra.mxu0 0
        %1175 = vmatprep.subr.bf16.mxu0 0
        %1176 = vmatpush1.bf16.xpose.msra.mxu0 0
        %1177 = vmatprep.subr.bf16.mxu0 0
        %1178 = vmatpush1.bf16.xpose.msra.mxu0 0
        %1179 = vmatprep.subr.bf16.mxu0 0
        %1180 = vmatpush1.bf16.xpose.msra.mxu0 0
        %1181 = vmatprep.subr.bf16.mxu0 0
        %1182 = vmatpush1.bf16.xpose.msra.mxu0 0
        %1183 = vmatprep.subr.bf16.mxu0 0
        %1184 = vmatpush1.bf16.xpose.msra.mxu0 0
        %1185 = vmatprep.subr.bf16.mxu0 0
        %1186 = vmatpush1.bf16.xpose.msra.mxu0 0
        %1187 = vmatprep.subr.bf16.mxu0 0
        %1188 = vmatpush1.bf16.xpose.msra.mxu0 0
        %1189 = vmatprep.subr.bf16.mxu0 0
        %1190 = vmatpush1.bf16.xpose.msra.mxu0 0
        %1191 = vmatprep.subr.bf16.mxu0 0
        %1192 = vmatpush1.bf16.xpose.msra.mxu0 0
        %1193 = vmatprep.subr.bf16.mxu0 0
        %1194 = vmatpush1.bf16.xpose.msra.mxu0 0
        %1195 = vmatprep.mubr.bf16.mxu0 0
        %1196 = vmatmul.mubr.bf16.gmra.mrb[0].mxu0 %v1158
        %v1197 = vpop.f32.mrb[0].mxu0
        %v1198 = vadd.f32 0.0, %v1197
        %v1199 = vpop.f32.mrb[0].mxu0
        %v1200 = vpop.f32.mrb[0].mxu0
        %v1201 = vpop.f32.mrb[0].mxu0
        %1202 = vdwg.mxu0
        %v1203 = vsel %vm730, %v1198, -inf
        %1204 = vmax.xlane.f32.xlu0 %v1203
        %v1205 = vpop.xlane.xlu0 %1204
        %v1206 = vsub.f32 %v1198, %v1205
        %v1207 = vmul.f32 %v1206, 1.442695
        %v1208 = vpow.pop %v1207
        %v1209 = vsel %vm730, %v1208, 0.0
        %1210 = vadd.xlane.f32.xlu0 %v1209
        %v1211 = vpop.xlane.xlu0 %1210
        %v1212 = vrcp.pop %v1211
        %v1213 = vmul.f32 %v1208, %v1212
        %v1214 = vpack.c.bf16 %v1213, %v1213
        %v1216 = vsel %vm730, %v1214, 0
        %v1219 = vsel %vm746, %v1154, 0
        %1221 = vmatprep.subr.bf16.mxu0 0
        %1222 = vmatpush1.bf16.msra.mxu0 %v1219
        %1223 = vmatprep.subr.bf16.mxu0 0
        %1224 = vmatpush1.bf16.msra.mxu0 0
        %1225 = vmatprep.subr.bf16.mxu0 0
        %1226 = vmatpush1.bf16.msra.mxu0 0
        %1227 = vmatprep.subr.bf16.mxu0 0
        %1228 = vmatpush1.bf16.msra.mxu0 0
        %1229 = vmatprep.subr.bf16.mxu0 0
        %1230 = vmatpush1.bf16.msra.mxu0 0
        %1231 = vmatprep.subr.bf16.mxu0 0
        %1232 = vmatpush1.bf16.msra.mxu0 0
        %1233 = vmatprep.subr.bf16.mxu0 0
        %1234 = vmatpush1.bf16.msra.mxu0 0
        %1235 = vmatprep.subr.bf16.mxu0 0
        %1236 = vmatpush1.bf16.msra.mxu0 0
        %1237 = vmatprep.subr.bf16.mxu0 0
        %1238 = vmatpush1.bf16.msra.mxu0 0
        %1239 = vmatprep.subr.bf16.mxu0 0
        %1240 = vmatpush1.bf16.msra.mxu0 0
        %1241 = vmatprep.subr.bf16.mxu0 0
        %1242 = vmatpush1.bf16.msra.mxu0 0
        %1243 = vmatprep.subr.bf16.mxu0 0
        %1244 = vmatpush1.bf16.msra.mxu0 0
        %1245 = vmatprep.subr.bf16.mxu0 0
        %1246 = vmatpush1.bf16.msra.mxu0 0
        %1247 = vmatprep.subr.bf16.mxu0 0
        %1248 = vmatpush1.bf16.msra.mxu0 0
        %1249 = vmatprep.subr.bf16.mxu0 0
        %1250 = vmatpush1.bf16.msra.mxu0 0
        %1251 = vmatprep.subr.bf16.mxu0 0
        %1252 = vmatpush1.bf16.msra.mxu0 0
        %1253 = vmatprep.mubr.bf16.mxu0 0
        %1254 = vmatmul.mubr.bf16.gmra.mrb[0].mxu0 %v1216
        %v1255 = vpop.f32.mrb[0].mxu0
        %v1256 = vadd.f32 0.0, %v1255
        %v1257 = vpop.f32.mrb[0].mxu0
        %v1258 = vpop.f32.mrb[0].mxu0
        %v1259 = vpop.f32.mrb[0].mxu0
        %1260 = vdwg.mxu0
        %v1261 = vpack.c.bf16 %v1256, %v1256
        %v1263 = vunpack.c.l.b16 %v1261
        %v1264 = vpack.c.b16 %v1263, %v1263
        %1265 = vrot.lane.b32.xlu0 %v1264, 16
        %v1266 = vpop.permute.xlu0 %1265
        %vm1268 = vcmask 158848
        %1269 = vst.msk [vmem:[#allocation3] sm:$0xf] %vm1268, %v1266
        %s1270 = scalar_lea.vmem [#allocation2], 20
        %v1271 = vld [vmem:[%s1270] sm:$0x7]
        %s1272 = scalar_lea.vmem [#allocation2], 52
        %v1273 = vld [vmem:[%s1272] sm:$0x7]
        %1274 = vrot.lane.b32.xlu0 %v679, 108
        %v1275 = vpop.permute.xlu0 %1274
        %v1277 = vsel %vm683, %v1275, 0
        %v1280 = vsel %vm683, %v1271, 0
        %1282 = vmatprep.subr.bf16.mxu0 0
        %1283 = vmatpush1.bf16.xpose.msra.mxu0 %v1280
        %1284 = vmatprep.subr.bf16.mxu0 0
        %1285 = vmatpush1.bf16.xpose.msra.mxu0 0
        %1286 = vmatprep.subr.bf16.mxu0 0
        %1287 = vmatpush1.bf16.xpose.msra.mxu0 0
        %1288 = vmatprep.subr.bf16.mxu0 0
        %1289 = vmatpush1.bf16.xpose.msra.mxu0 0
        %1290 = vmatprep.subr.bf16.mxu0 0
        %1291 = vmatpush1.bf16.xpose.msra.mxu0 0
        %1292 = vmatprep.subr.bf16.mxu0 0
        %1293 = vmatpush1.bf16.xpose.msra.mxu0 0
        %1294 = vmatprep.subr.bf16.mxu0 0
        %1295 = vmatpush1.bf16.xpose.msra.mxu0 0
        %1296 = vmatprep.subr.bf16.mxu0 0
        %1297 = vmatpush1.bf16.xpose.msra.mxu0 0
        %1298 = vmatprep.subr.bf16.mxu0 0
        %1299 = vmatpush1.bf16.xpose.msra.mxu0 0
        %1300 = vmatprep.subr.bf16.mxu0 0
        %1301 = vmatpush1.bf16.xpose.msra.mxu0 0
        %1302 = vmatprep.subr.bf16.mxu0 0
        %1303 = vmatpush1.bf16.xpose.msra.mxu0 0
        %1304 = vmatprep.subr.bf16.mxu0 0
        %1305 = vmatpush1.bf16.xpose.msra.mxu0 0
        %1306 = vmatprep.subr.bf16.mxu0 0
        %1307 = vmatpush1.bf16.xpose.msra.mxu0 0
        %1308 = vmatprep.subr.bf16.mxu0 0
        %1309 = vmatpush1.bf16.xpose.msra.mxu0 0
        %1310 = vmatprep.subr.bf16.mxu0 0
        %1311 = vmatpush1.bf16.xpose.msra.mxu0 0
        %1312 = vmatprep.subr.bf16.mxu0 0
        %1313 = vmatpush1.bf16.xpose.msra.mxu0 0
        %1314 = vmatprep.mubr.bf16.mxu0 0
        %1315 = vmatmul.mubr.bf16.gmra.mrb[0].mxu0 %v1277
        %v1316 = vpop.f32.mrb[0].mxu0
        %v1317 = vadd.f32 0.0, %v1316
        %v1318 = vpop.f32.mrb[0].mxu0
        %v1319 = vpop.f32.mrb[0].mxu0
        %v1320 = vpop.f32.mrb[0].mxu0
        %1321 = vdwg.mxu0
        %v1322 = vsel %vm730, %v1317, -inf
        %1323 = vmax.xlane.f32.xlu0 %v1322
        %v1324 = vpop.xlane.xlu0 %1323
        %v1325 = vsub.f32 %v1317, %v1324
        %v1326 = vmul.f32 %v1325, 1.442695
        %v1327 = vpow.pop %v1326
        %v1328 = vsel %vm730, %v1327, 0.0
        %1329 = vadd.xlane.f32.xlu0 %v1328
        %v1330 = vpop.xlane.xlu0 %1329
        %v1331 = vrcp.pop %v1330
        %v1332 = vmul.f32 %v1327, %v1331
        %v1333 = vpack.c.bf16 %v1332, %v1332
        %v1335 = vsel %vm730, %v1333, 0
        %v1338 = vsel %vm746, %v1273, 0
        %1340 = vmatprep.subr.bf16.mxu0 0
        %1341 = vmatpush1.bf16.msra.mxu0 %v1338
        %1342 = vmatprep.subr.bf16.mxu0 0
        %1343 = vmatpush1.bf16.msra.mxu0 0
        %1344 = vmatprep.subr.bf16.mxu0 0
        %1345 = vmatpush1.bf16.msra.mxu0 0
        %1346 = vmatprep.subr.bf16.mxu0 0
        %1347 = vmatpush1.bf16.msra.mxu0 0
        %1348 = vmatprep.subr.bf16.mxu0 0
        %1349 = vmatpush1.bf16.msra.mxu0 0
        %1350 = vmatprep.subr.bf16.mxu0 0
        %1351 = vmatpush1.bf16.msra.mxu0 0
        %1352 = vmatprep.subr.bf16.mxu0 0
        %1353 = vmatpush1.bf16.msra.mxu0 0
        %1354 = vmatprep.subr.bf16.mxu0 0
        %1355 = vmatpush1.bf16.msra.mxu0 0
        %1356 = vmatprep.subr.bf16.mxu0 0
        %1357 = vmatpush1.bf16.msra.mxu0 0
        %1358 = vmatprep.subr.bf16.mxu0 0
        %1359 = vmatpush1.bf16.msra.mxu0 0
        %1360 = vmatprep.subr.bf16.mxu0 0
        %1361 = vmatpush1.bf16.msra.mxu0 0
        %1362 = vmatprep.subr.bf16.mxu0 0
        %1363 = vmatpush1.bf16.msra.mxu0 0
        %1364 = vmatprep.subr.bf16.mxu0 0
        %1365 = vmatpush1.bf16.msra.mxu0 0
        %1366 = vmatprep.subr.bf16.mxu0 0
        %1367 = vmatpush1.bf16.msra.mxu0 0
        %1368 = vmatprep.subr.bf16.mxu0 0
        %1369 = vmatpush1.bf16.msra.mxu0 0
        %1370 = vmatprep.subr.bf16.mxu0 0
        %1371 = vmatpush1.bf16.msra.mxu0 0
        %1372 = vmatprep.mubr.bf16.mxu0 0
        %1373 = vmatmul.mubr.bf16.gmra.mrb[0].mxu0 %v1335
        %v1374 = vpop.f32.mrb[0].mxu0
        %v1375 = vadd.f32 0.0, %v1374
        %v1376 = vpop.f32.mrb[0].mxu0
        %v1377 = vpop.f32.mrb[0].mxu0
        %v1378 = vpop.f32.mrb[0].mxu0
        %1379 = vdwg.mxu0
        %v1380 = vpack.c.bf16 %v1375, %v1375
        %v1382 = vunpack.c.l.b16 %v1380
        %v1383 = vpack.c.b16 %v1382, %v1382
        %1384 = vrot.lane.b32.xlu0 %v1383, 20
        %v1385 = vpop.permute.xlu0 %1384
        %vm1387 = vcmask 191648
        %1388 = vst.msk [vmem:[#allocation3] sm:$0xf] %vm1387, %v1385
        %s1389 = scalar_lea.vmem [#allocation2], 24
        %v1390 = vld [vmem:[%s1389] sm:$0x7]
        %s1391 = scalar_lea.vmem [#allocation2], 56
        %v1392 = vld [vmem:[%s1391] sm:$0x7]
        %1393 = vrot.lane.b32.xlu0 %v679, 104
        %v1394 = vpop.permute.xlu0 %1393
        %v1396 = vsel %vm683, %v1394, 0
        %v1399 = vsel %vm683, %v1390, 0
        %1401 = vmatprep.subr.bf16.mxu0 0
        %1402 = vmatpush1.bf16.xpose.msra.mxu0 %v1399
        %1403 = vmatprep.subr.bf16.mxu0 0
        %1404 = vmatpush1.bf16.xpose.msra.mxu0 0
        %1405 = vmatprep.subr.bf16.mxu0 0
        %1406 = vmatpush1.bf16.xpose.msra.mxu0 0
        %1407 = vmatprep.subr.bf16.mxu0 0
        %1408 = vmatpush1.bf16.xpose.msra.mxu0 0
        %1409 = vmatprep.subr.bf16.mxu0 0
        %1410 = vmatpush1.bf16.xpose.msra.mxu0 0
        %1411 = vmatprep.subr.bf16.mxu0 0
        %1412 = vmatpush1.bf16.xpose.msra.mxu0 0
        %1413 = vmatprep.subr.bf16.mxu0 0
        %1414 = vmatpush1.bf16.xpose.msra.mxu0 0
        %1415 = vmatprep.subr.bf16.mxu0 0
        %1416 = vmatpush1.bf16.xpose.msra.mxu0 0
        %1417 = vmatprep.subr.bf16.mxu0 0
        %1418 = vmatpush1.bf16.xpose.msra.mxu0 0
        %1419 = vmatprep.subr.bf16.mxu0 0
        %1420 = vmatpush1.bf16.xpose.msra.mxu0 0
        %1421 = vmatprep.subr.bf16.mxu0 0
        %1422 = vmatpush1.bf16.xpose.msra.mxu0 0
        %1423 = vmatprep.subr.bf16.mxu0 0
        %1424 = vmatpush1.bf16.xpose.msra.mxu0 0
        %1425 = vmatprep.subr.bf16.mxu0 0
        %1426 = vmatpush1.bf16.xpose.msra.mxu0 0
        %1427 = vmatprep.subr.bf16.mxu0 0
        %1428 = vmatpush1.bf16.xpose.msra.mxu0 0
        %1429 = vmatprep.subr.bf16.mxu0 0
        %1430 = vmatpush1.bf16.xpose.msra.mxu0 0
        %1431 = vmatprep.subr.bf16.mxu0 0
        %1432 = vmatpush1.bf16.xpose.msra.mxu0 0
        %1433 = vmatprep.mubr.bf16.mxu0 0
        %1434 = vmatmul.mubr.bf16.gmra.mrb[0].mxu0 %v1396
        %v1435 = vpop.f32.mrb[0].mxu0
        %v1436 = vadd.f32 0.0, %v1435
        %v1437 = vpop.f32.mrb[0].mxu0
        %v1438 = vpop.f32.mrb[0].mxu0
        %v1439 = vpop.f32.mrb[0].mxu0
        %1440 = vdwg.mxu0
        %v1441 = vsel %vm730, %v1436, -inf
        %1442 = vmax.xlane.f32.xlu0 %v1441
        %v1443 = vpop.xlane.xlu0 %1442
        %v1444 = vsub.f32 %v1436, %v1443
        %v1445 = vmul.f32 %v1444, 1.442695
        %v1446 = vpow.pop %v1445
        %v1447 = vsel %vm730, %v1446, 0.0
        %1448 = vadd.xlane.f32.xlu0 %v1447
        %v1449 = vpop.xlane.xlu0 %1448
        %v1450 = vrcp.pop %v1449
        %v1451 = vmul.f32 %v1446, %v1450
        %v1452 = vpack.c.bf16 %v1451, %v1451
        %v1454 = vsel %vm730, %v1452, 0
        %v1457 = vsel %vm746, %v1392, 0
        %1459 = vmatprep.subr.bf16.mxu0 0
        %1460 = vmatpush1.bf16.msra.mxu0 %v1457
        %1461 = vmatprep.subr.bf16.mxu0 0
        %1462 = vmatpush1.bf16.msra.mxu0 0
        %1463 = vmatprep.subr.bf16.mxu0 0
        %1464 = vmatpush1.bf16.msra.mxu0 0
        %1465 = vmatprep.subr.bf16.mxu0 0
        %1466 = vmatpush1.bf16.msra.mxu0 0
        %1467 = vmatprep.subr.bf16.mxu0 0
        %1468 = vmatpush1.bf16.msra.mxu0 0
        %1469 = vmatprep.subr.bf16.mxu0 0
        %1470 = vmatpush1.bf16.msra.mxu0 0
        %1471 = vmatprep.subr.bf16.mxu0 0
        %1472 = vmatpush1.bf16.msra.mxu0 0
        %1473 = vmatprep.subr.bf16.mxu0 0
        %1474 = vmatpush1.bf16.msra.mxu0 0
        %1475 = vmatprep.subr.bf16.mxu0 0
        %1476 = vmatpush1.bf16.msra.mxu0 0
        %1477 = vmatprep.subr.bf16.mxu0 0
        %1478 = vmatpush1.bf16.msra.mxu0 0
        %1479 = vmatprep.subr.bf16.mxu0 0
        %1480 = vmatpush1.bf16.msra.mxu0 0
        %1481 = vmatprep.subr.bf16.mxu0 0
        %1482 = vmatpush1.bf16.msra.mxu0 0
        %1483 = vmatprep.subr.bf16.mxu0 0
        %1484 = vmatpush1.bf16.msra.mxu0 0
        %1485 = vmatprep.subr.bf16.mxu0 0
        %1486 = vmatpush1.bf16.msra.mxu0 0
        %1487 = vmatprep.subr.bf16.mxu0 0
        %1488 = vmatpush1.bf16.msra.mxu0 0
        %1489 = vmatprep.subr.bf16.mxu0 0
        %1490 = vmatpush1.bf16.msra.mxu0 0
        %1491 = vmatprep.mubr.bf16.mxu0 0
        %1492 = vmatmul.mubr.bf16.gmra.mrb[0].mxu0 %v1454
        %v1493 = vpop.f32.mrb[0].mxu0
        %v1494 = vadd.f32 0.0, %v1493
        %v1495 = vpop.f32.mrb[0].mxu0
        %v1496 = vpop.f32.mrb[0].mxu0
        %v1497 = vpop.f32.mrb[0].mxu0
        %1498 = vdwg.mxu0
        %v1499 = vpack.c.bf16 %v1494, %v1494
        %v1501 = vunpack.c.l.b16 %v1499
        %v1502 = vpack.c.b16 %v1501, %v1501
        %1503 = vrot.lane.b32.xlu0 %v1502, 24
        %v1504 = vpop.permute.xlu0 %1503
        %vm1506 = vcmask 224448
        %1507 = vst.msk [vmem:[#allocation3] sm:$0xf] %vm1506, %v1504
        %s1508 = scalar_lea.vmem [#allocation2], 28
        %v1509 = vld [vmem:[%s1508] sm:$0x7]
        %s1510 = scalar_lea.vmem [#allocation2], 60
        %v1511 = vld [vmem:[%s1510] sm:$0x7]
        %1512 = vrot.lane.b32.xlu0 %v679, 100
        %v1513 = vpop.permute.xlu0 %1512
        %v1515 = vsel %vm683, %v1513, 0
        %v1518 = vsel %vm683, %v1509, 0
        %1520 = vmatprep.subr.bf16.mxu0 0
        %1521 = vmatpush1.bf16.xpose.msra.mxu0 %v1518
        %1522 = vmatprep.subr.bf16.mxu0 0
        %1523 = vmatpush1.bf16.xpose.msra.mxu0 0
        %1524 = vmatprep.subr.bf16.mxu0 0
        %1525 = vmatpush1.bf16.xpose.msra.mxu0 0
        %1526 = vmatprep.subr.bf16.mxu0 0
        %1527 = vmatpush1.bf16.xpose.msra.mxu0 0
        %1528 = vmatprep.subr.bf16.mxu0 0
        %1529 = vmatpush1.bf16.xpose.msra.mxu0 0
        %1530 = vmatprep.subr.bf16.mxu0 0
        %1531 = vmatpush1.bf16.xpose.msra.mxu0 0
        %1532 = vmatprep.subr.bf16.mxu0 0
        %1533 = vmatpush1.bf16.xpose.msra.mxu0 0
        %1534 = vmatprep.subr.bf16.mxu0 0
        %1535 = vmatpush1.bf16.xpose.msra.mxu0 0
        %1536 = vmatprep.subr.bf16.mxu0 0
        %1537 = vmatpush1.bf16.xpose.msra.mxu0 0
        %1538 = vmatprep.subr.bf16.mxu0 0
        %1539 = vmatpush1.bf16.xpose.msra.mxu0 0
        %1540 = vmatprep.subr.bf16.mxu0 0
        %1541 = vmatpush1.bf16.xpose.msra.mxu0 0
        %1542 = vmatprep.subr.bf16.mxu0 0
        %1543 = vmatpush1.bf16.xpose.msra.mxu0 0
        %1544 = vmatprep.subr.bf16.mxu0 0
        %1545 = vmatpush1.bf16.xpose.msra.mxu0 0
        %1546 = vmatprep.subr.bf16.mxu0 0
        %1547 = vmatpush1.bf16.xpose.msra.mxu0 0
        %1548 = vmatprep.subr.bf16.mxu0 0
        %1549 = vmatpush1.bf16.xpose.msra.mxu0 0
        %1550 = vmatprep.subr.bf16.mxu0 0
        %1551 = vmatpush1.bf16.xpose.msra.mxu0 0
        %1552 = vmatprep.mubr.bf16.mxu0 0
        %1553 = vmatmul.mubr.bf16.gmra.mrb[0].mxu0 %v1515
        %v1554 = vpop.f32.mrb[0].mxu0
        %v1555 = vadd.f32 0.0, %v1554
        %v1556 = vpop.f32.mrb[0].mxu0
        %v1557 = vpop.f32.mrb[0].mxu0
        %v1558 = vpop.f32.mrb[0].mxu0
        %1559 = vdwg.mxu0
        %v1560 = vsel %vm730, %v1555, -inf
        %1561 = vmax.xlane.f32.xlu0 %v1560
        %v1562 = vpop.xlane.xlu0 %1561
        %v1563 = vsub.f32 %v1555, %v1562
        %v1564 = vmul.f32 %v1563, 1.442695
        %v1565 = vpow.pop %v1564
        %v1566 = vsel %vm730, %v1565, 0.0
        %1567 = vadd.xlane.f32.xlu0 %v1566
        %v1568 = vpop.xlane.xlu0 %1567
        %v1569 = vrcp.pop %v1568
        %v1570 = vmul.f32 %v1565, %v1569
        %v1571 = vpack.c.bf16 %v1570, %v1570
        %v1573 = vsel %vm730, %v1571, 0
        %v1576 = vsel %vm746, %v1511, 0
        %1578 = vmatprep.subr.bf16.mxu0 0
        %1579 = vmatpush1.bf16.msra.mxu0 %v1576
        %1580 = vmatprep.subr.bf16.mxu0 0
        %1581 = vmatpush1.bf16.msra.mxu0 0
        %1582 = vmatprep.subr.bf16.mxu0 0
        %1583 = vmatpush1.bf16.msra.mxu0 0
        %1584 = vmatprep.subr.bf16.mxu0 0
        %1585 = vmatpush1.bf16.msra.mxu0 0
        %1586 = vmatprep.subr.bf16.mxu0 0
        %1587 = vmatpush1.bf16.msra.mxu0 0
        %1588 = vmatprep.subr.bf16.mxu0 0
        %1589 = vmatpush1.bf16.msra.mxu0 0
        %1590 = vmatprep.subr.bf16.mxu0 0
        %1591 = vmatpush1.bf16.msra.mxu0 0
        %1592 = vmatprep.subr.bf16.mxu0 0
        %1593 = vmatpush1.bf16.msra.mxu0 0
        %1594 = vmatprep.subr.bf16.mxu0 0
        %1595 = vmatpush1.bf16.msra.mxu0 0
        %1596 = vmatprep.subr.bf16.mxu0 0
        %1597 = vmatpush1.bf16.msra.mxu0 0
        %1598 = vmatprep.subr.bf16.mxu0 0
        %1599 = vmatpush1.bf16.msra.mxu0 0
        %1600 = vmatprep.subr.bf16.mxu0 0
        %1601 = vmatpush1.bf16.msra.mxu0 0
        %1602 = vmatprep.subr.bf16.mxu0 0
        %1603 = vmatpush1.bf16.msra.mxu0 0
        %1604 = vmatprep.subr.bf16.mxu0 0
        %1605 = vmatpush1.bf16.msra.mxu0 0
        %1606 = vmatprep.subr.bf16.mxu0 0
        %1607 = vmatpush1.bf16.msra.mxu0 0
        %1608 = vmatprep.subr.bf16.mxu0 0
        %1609 = vmatpush1.bf16.msra.mxu0 0
        %1610 = vmatprep.mubr.bf16.mxu0 0
        %1611 = vmatmul.mubr.bf16.gmra.mrb[0].mxu0 %v1573
        %v1612 = vpop.f32.mrb[0].mxu0
        %v1613 = vadd.f32 0.0, %v1612
        %v1614 = vpop.f32.mrb[0].mxu0
        %v1615 = vpop.f32.mrb[0].mxu0
        %v1616 = vpop.f32.mrb[0].mxu0
        %1617 = vdwg.mxu0
        %v1618 = vpack.c.bf16 %v1613, %v1613
        %v1620 = vunpack.c.l.b16 %v1618
        %v1621 = vpack.c.b16 %v1620, %v1620
        %1622 = vrot.lane.b32.xlu0 %v1621, 28
        %v1623 = vpop.permute.xlu0 %1622
        %vm1625 = vcmask 257248
        %1626 = vst.msk [vmem:[#allocation3] sm:$0xf] %vm1625, %v1623
        %v1627 = vld [vmem:[#allocation3] sm:$0xf]
        %v1628 = vld [vmem:[#allocation15] sm:$0xf]
        %v1629 = vld [vmem:[#allocation15 + $0x4] sm:$0xf]
        %v1630 = vld [vmem:[#allocation15 + $0x8] sm:$0xf]
        %v1631 = vld [vmem:[#allocation15 + $0xc] sm:$0xf]
        %v1632 = vld [vmem:[#allocation16] sm:$0x1]
        %v1634 = vlaneseq
        %v1635 = vshrl.u32 %v1634, 7
        %v1636 = vsub.s32 0, %v1635
        %v1637 = vrot.slane %v1632, %v1636
        %v1643 = vunpack.c.l.b16 %v1628
        %v1644 = vunpack.c.l.b16 %v1629
        %v1645 = vunpack.c.l.b16 %v1630
        %v1646 = vunpack.c.l.b16 %v1631
        %v1647 = vpack.c.b16 %v1644, %v1643
        %v1648 = vpack.c.b16 %v1646, %v1645
        %v1652 = vsel %vm634, %v1627, 0
        %1654 = vmatprep.subr.bf16.mxu0 0
        %1655 = vmatpush1.bf16.msra.mxu0 %v1647
        %1656 = vmatprep.subr.bf16.mxu0 0
        %1657 = vmatpush1.bf16.msra.mxu0 %v1648
        %1658 = vmatprep.subr.bf16.mxu0 0
        %1659 = vmatpush1.bf16.msra.mxu0 0
        %1660 = vmatprep.subr.bf16.mxu0 0
        %1661 = vmatpush1.bf16.msra.mxu0 0
        %1662 = vmatprep.subr.bf16.mxu0 0
        %1663 = vmatpush1.bf16.msra.mxu0 0
        %1664 = vmatprep.subr.bf16.mxu0 0
        %1665 = vmatpush1.bf16.msra.mxu0 0
        %1666 = vmatprep.subr.bf16.mxu0 0
        %1667 = vmatpush1.bf16.msra.mxu0 0
        %1668 = vmatprep.subr.bf16.mxu0 0
        %1669 = vmatpush1.bf16.msra.mxu0 0
        %1670 = vmatprep.subr.bf16.mxu0 0
        %1671 = vmatpush1.bf16.msra.mxu0 0
        %1672 = vmatprep.subr.bf16.mxu0 0
        %1673 = vmatpush1.bf16.msra.mxu0 0
        %1674 = vmatprep.subr.bf16.mxu0 0
        %1675 = vmatpush1.bf16.msra.mxu0 0
        %1676 = vmatprep.subr.bf16.mxu0 0
        %1677 = vmatpush1.bf16.msra.mxu0 0
        %1678 = vmatprep.subr.bf16.mxu0 0
        %1679 = vmatpush1.bf16.msra.mxu0 0
        %1680 = vmatprep.subr.bf16.mxu0 0
        %1681 = vmatpush1.bf16.msra.mxu0 0
        %1682 = vmatprep.subr.bf16.mxu0 0
        %1683 = vmatpush1.bf16.msra.mxu0 0
        %1684 = vmatprep.subr.bf16.mxu0 0
        %1685 = vmatpush1.bf16.msra.mxu0 0
        %1686 = vmatprep.mubr.bf16.mxu0 0
        %1687 = vmatmul.mubr.bf16.gmra.mrb[0].mxu0 %v1652
        %v1688 = vpop.f32.mrb[0].mxu0
        %v1689 = vadd.f32 %v1637, %v1688
        %v1690 = vpop.f32.mrb[0].mxu0
        %v1691 = vpop.f32.mrb[0].mxu0
        %v1692 = vpop.f32.mrb[0].mxu0
        %1693 = vdwg.mxu0
        %1694 = vst.msk [vmem:[%s455] sm:$0xff] %vm634, %v1689
        %s1695 = sand.u32 %s233, 1
        %s1696 = scalar_lea.sflag [#allocation6], %s1695
        %s1697 = sand.u32 %s233, 1
        %s1698 = smul.addr %s1697, 8
        %s1699 = scalar_lea.vmem [#allocation18], %s1698
        // Predicated region
        $region89: #{tpu_custom_call.1} parent=51 // pred_check
          %p1700 = pneg %p243
        $region90: #{tpu_custom_call.1} parent=51 // pred_check_branch
          %1702 = sbr.rel (%p1700) target = $region92
        $region91: #{tpu_custom_call.1} parent=51 // pred_region
          %s1704 = ssub.s32 128, 128
          %1705 = vsyncadd %s1696, %s1704
          %s1706 = sadd.s32 %s36, %s35
          %s1707 = smul.addr %s1706, 128
          %s1708 = scalar_lea.hbm %s8, %s1707
          %s1710 = sshll.u32 %s1699, 4
          %s1711 = int_to_ptr.vmem [resolvable:$true] %s1710
          %1713 = dma.vmem_to_hbm [thread:$0]  %s1711, 128, %s1708, %s1696
        $region92: #{tpu_custom_call.1} parent=51 // pred_fallthru
          _
      $region52: #{tpu_custom_call.1} parent=5 // pred_fallthru
        _
      %p1714 = scmp.le.s32.totalorder 2, %s26
      // Predicated region
      $region93: #{tpu_custom_call.1} parent=5 // pred_check
        %p1715 = pneg %p1714
      $region94: #{tpu_custom_call.1} parent=5 // pred_check_branch
        %1717 = sbr.rel (%p1715) target = $region96
      $region95: #{tpu_custom_call.1} parent=5 // pred_region
        %s1718 = ssub.s32 %s26, 2
        // Predicated region
        $region97: #{tpu_custom_call.1} parent=95 // pred_check
          %p1719 = pneg %p249
        $region98: #{tpu_custom_call.1} parent=95 // pred_check_branch
          %1721 = sbr.rel (%p1719) target = $region100
        $region99: #{tpu_custom_call.1} parent=95 // pred_region
          %s1722 = sand.u32 %s234, 1
          %s1723 = scalar_lea.sflag [#allocation6], %s1722
          %s1724 = sand.u32 %s234, 1
          %s1725 = smul.addr %s1724, 8
          %s1726 = scalar_lea.vmem [#allocation18], %s1725
          %1727 = dma.done %s1723, 128
        $region100: #{tpu_custom_call.1} parent=95 // pred_fallthru
          _
      $region96: #{tpu_custom_call.1} parent=5 // pred_fallthru
        _
    $region6: #{tpu_custom_call.1} parent=1 // loop_footer
      %s30 = sadd.s32 1, %s26
    $region7: #{tpu_custom_call.1} parent=1 // loop_footer_branch
      %25 = sbr.rel target = $region3
    $region8: #{tpu_custom_call.1} parent=1 // loop_exit
      _
    %1728 = vsyncpa [#allocation5], 1
    %s1729 = scalar_lea.sflag [#allocation5], 1
    %1730 = vsyncpa %s1729, 1
    %1731 = vsyncpa [#allocation8], 1
    %s1732 = scalar_lea.sflag [#allocation8], 1
    %1733 = vsyncpa %s1732, 1
    %1734 = vsyncpa [#allocation11], 1
    %1735 = vsyncpa [#allocation14], 1
    %1736 = vsyncpa [#allocation17], 1
    %1737 = vsyncpa [#allocation6], 1
    %s1738 = scalar_lea.sflag [#allocation6], 1
    %1739 = vsyncpa %s1738, 1

</llo_original>
